<compile_context>
chip_gen: v7x
topology: tpu7x:2x2x1
jax: 0.10.0
libtpu: 0.0.40
codegen_flags: <defaults>
</compile_context>

<pallas_src>
import jax
import jax.numpy as jnp
from jax.experimental import pallas as pl
from jax.experimental.pallas import tpu as pltpu


# ----------------------------------------------------------------------------
# Kernel: 3 GEMMs (2 of them bf16 x bf16 -> f32 acc), 2 ReLUs, one bias-add.
# All dueling algebra (mean-subtract, value broadcast) is baked into wc / bc.
# ----------------------------------------------------------------------------
def _dqn_kernel(state_ref, w1_ref, b1_ref, wh_ref, bh_ref, wc_ref, bc_ref, out_ref):
    # x = relu(state @ W1 + b1)                      (TB, 128) lane-dense
    x = jnp.dot(state_ref[...], w1_ref[...], preferred_element_type=jnp.float32)
    x = jnp.maximum(x + b1_ref[...], 0.0)

    # hidden_cat = relu(x @ [Wa1 | Wv1] + [ba1 | bv1])   (TB, 1024)
    h = jnp.dot(x.astype(wh_ref.dtype), wh_ref[...],
                preferred_element_type=jnp.float32)
    h = jnp.maximum(h + bh_ref[...], 0.0)

    # Q (lane-padded) = hidden_cat @ Wc + bc         (TB, A_pad)
    q = jnp.dot(h.astype(wc_ref.dtype), wc_ref[...],
                preferred_element_type=jnp.float32)
    out_ref[...] = (q + bc_ref[...]).astype(out_ref.dtype)


# ----------------------------------------------------------------------------
# One-time parameter fusion (do this once, outside the hot path).
# ----------------------------------------------------------------------------
def fuse_params(params, a_pad=128, fc1_pad=128, weight_dtype=jnp.bfloat16):
    """Fold the dueling head algebra into the weights, pad to lane-dense shapes,
    and store the two big GEMM weights in bf16.

    Returns (w1, b1, wh, bh, wc, bc, action_size, a_pad)."""
    (w1, b1, wa1, ba1, wv1, bv1, wa2, ba2, wv2, bv2) = params
    state_size, fc1_units = w1.shape
    action_size = wa2.shape[1]
    a_pad = max(a_pad, ((action_size + 127) // 128) * 128)
    fc1_pad = max(fc1_pad, ((fc1_units + 127) // 128) * 128)

    # fc1 padded to 128 output features: zero columns/rows contribute nothing,
    # and relu keeps the padded x columns at exactly 0.
    w1p = jnp.pad(w1, ((0, 0), (0, fc1_pad - fc1_units)))       # (S, 128)
    b1p = jnp.pad(b1, ((0, 0), (0, fc1_pad - fc1_units)))       # (1, 128)

    # Fused hidden layer: (128, 1024), (1, 1024); padded input rows are zero.
    wh = jnp.concatenate([wa1, wv1], axis=1)                    # (64, 1024)
    wh = jnp.pad(wh, ((0, fc1_pad - fc1_units), (0, 0)))        # (128, 1024)
    bh = jnp.concatenate([ba1, bv1], axis=1)                    # (1, 1024)

    # Fused dueling head:
    #   Q = val + adv - mean_a(adv)
    #     = h_adv @ (Wa2 - mean_col(Wa2)) + (ba2 - mean(ba2)) + h_val @ Wv2 + bv2
    wc_adv = wa2 - jnp.mean(wa2, axis=1, keepdims=True)             # (512, A)
    wc_val = jnp.broadcast_to(wv2, (wv2.shape[0], action_size))     # (512, A)
    wc = jnp.concatenate([wc_adv, wc_val], axis=0)                  # (1024, A)
    bc = ba2 - jnp.mean(ba2, axis=1, keepdims=True) + bv2           # (1, A)

    # Lane-dense output: pad to A_pad columns with zeros (sliced off later).
    wc = jnp.pad(wc, ((0, 0), (0, a_pad - action_size)))
    bc = jnp.pad(bc, ((0, 0), (0, a_pad - action_size)))

    # bf16 weights for the two MXU-bound GEMMs; biases stay f32.
    wh = wh.astype(weight_dtype)
    wc = wc.astype(weight_dtype)

    return (w1p, b1p, wh, bh, wc, bc, action_size, a_pad)


# ----------------------------------------------------------------------------
# Batch-tile selection: multiple of 8, capped at max_tile, and >= 2 tiles when
# B >= 16 so the "parallel" grid axis feeds both v7x TensorCores.
# ----------------------------------------------------------------------------
def _choose_tiling(B, max_tile=2048):
    b8 = max(8, ((B + 7) // 8) * 8)
    n_tiles = pl.cdiv(b8, max_tile)
    if B >= 16:
        n_tiles = max(n_tiles, 2)     # keep both TCs busy on v7x; harmless elsewhere
    tb = ((pl.cdiv(b8, n_tiles) + 7) // 8) * 8
    bp = n_tiles * tb
    return tb, bp, n_tiles


# ----------------------------------------------------------------------------
# Wrapper: batch-tiled pallas_call with resident (single-buffered) weights.
# ----------------------------------------------------------------------------
def double_q_forward(state, fused, *, max_tile=2048):
    """state: (B, state_size) f32 -> (B, action_size) f32."""
    (w1, b1, wh, bh, wc, bc, action_size, a_pad) = fused
    B, S = state.shape

    tb, bp, n_tiles = _choose_tiling(B, max_tile)
    state_p = state if bp == B else jnp.pad(state, ((0, bp - B), (0, 0)))

    weights = (w1, b1, wh, bh, wc, bc)
    flops = 2 * bp * (S * w1.shape[1] + wh.shape[0] * wh.shape[1]
                      + wc.shape[0] * a_pad)
    bytes_accessed = (state_p.size * state_p.dtype.itemsize
                      + bp * a_pad * 4
                      + sum(w.size * w.dtype.itemsize for w in weights))

    def run(single_buffer_weights):
        if single_buffer_weights:
            resident = lambda arr: pl.BlockSpec(arr.shape, lambda i: (0, 0),
                                                pipeline_mode=pl.Buffered(1))
        else:
            resident = lambda arr: pl.BlockSpec(arr.shape, lambda i: (0, 0))
        return pl.pallas_call(
            _dqn_kernel,
            out_shape=jax.ShapeDtypeStruct((bp, a_pad), jnp.float32),
            grid=(n_tiles,),
            in_specs=[
                pl.BlockSpec((tb, S), lambda i: (i, 0)),   # state: tiled over batch
                resident(w1), resident(b1),                # weights stay resident
                resident(wh), resident(bh),
                resident(wc), resident(bc),
            ],
            out_specs=pl.BlockSpec((tb, a_pad), lambda i: (i, 0)),
            compiler_params=pltpu.CompilerParams(
                dimension_semantics=("parallel",)),
            cost_estimate=pl.CostEstimate(
                flops=flops, transcendentals=0, bytes_accessed=bytes_accessed),
        )(state_p, w1, b1, wh, bh, wc, bc)

    try:
        # Grid-invariant weights only need one VMEM buffer each.
        out = jax.block_until_ready(run(single_buffer_weights=True))
    except Exception:
        # Fallback if this runtime rejects single-buffered BlockSpecs.
        out = run(single_buffer_weights=False)

    return out[:B, :action_size]


# ----------------------------------------------------------------------------
# PyTorch-style init + pure-JAX reference (unfused, f32) for verification.
# ----------------------------------------------------------------------------
def init_params(key, state_size, action_size, fc1_units=64, hidden=512):
    """nn.Linear-style init: U(-1/sqrt(fan_in), 1/sqrt(fan_in)).
    Weights stored as (in_features, out_features); biases as (1, out)."""
    def linear(k, fan_in, fan_out):
        kw, kb = jax.random.split(k)
        bound = 1.0 / jnp.sqrt(fan_in)
        w = jax.random.uniform(kw, (fan_in, fan_out), jnp.float32, -bound, bound)
        b = jax.random.uniform(kb, (1, fan_out), jnp.float32, -bound, bound)
        return w, b

    k1, k2, k3, k4, k5 = jax.random.split(key, 5)
    w1, b1 = linear(k1, state_size, fc1_units)     # fc1
    wa1, ba1 = linear(k2, 64, hidden)              # fc1_adv
    wv1, bv1 = linear(k3, 64, hidden)              # fc1_val
    wa2, ba2 = linear(k4, hidden, action_size)     # fc2_adv
    wv2, bv2 = linear(k5, hidden, 1)               # fc2_val
    return (w1, b1, wa1, ba1, wv1, bv1, wa2, ba2, wv2, bv2)


def reference_forward(state, params):
    """Pure-JAX f32 reference matching the PyTorch forward (no fusion)."""
    (w1, b1, wa1, ba1, wv1, bv1, wa2, ba2, wv2, bv2) = params
    x = jnp.maximum(state @ w1 + b1, 0.0)
    adv = jnp.maximum(x @ wa1 + ba1, 0.0)
    val = jnp.maximum(x @ wv1 + bv1, 0.0)
    adv = adv @ wa2 + ba2
    val = val @ wv2 + bv2
    return val + adv - jnp.mean(adv, axis=1, keepdims=True)


if __name__ == "__main__":
    key = jax.random.PRNGKey(0)
    k_params, k_state = jax.random.split(key)

    B, state_size, action_size = 2, 8, 4
    params = init_params(k_params, state_size, action_size)
    state = jax.random.normal(k_state, (B, state_size), jnp.float32)

    fused = fuse_params(params)                     # one-time weight fusion (bf16)
    fused = jax.tree_util.tree_map(
        lambda x: jax.block_until_ready(x) if isinstance(x, jax.Array) else x, fused)

    q = double_q_forward(state, fused)
    q = jax.block_until_ready(q)

    q_ref = reference_forward(state, params)
    assert q.shape == (B, action_size)
    # bf16 GEMM weights (f32 accumulation) => ~1e-2-scale deviation vs f32 reference.
    assert jnp.allclose(q, q_ref, atol=2e-2, rtol=2e-2), "mismatch vs reference"

    print("KERNEL_OK")
</pallas_src>

<mosaic_0001>
module attributes {stable_mosaic.version = 11 : i64} {
  func.func @_dqn_kernel(%arg0: i32, %arg1: memref<8x8xf32, #tpu.memory_space<vmem>>, %arg2: memref<8x128xf32, #tpu.memory_space<vmem>>, %arg3: memref<1x128xf32, #tpu.memory_space<vmem>>, %arg4: memref<128x1024xbf16, #tpu.memory_space<vmem>>, %arg5: memref<1x1024xf32, #tpu.memory_space<vmem>>, %arg6: memref<1024x128xbf16, #tpu.memory_space<vmem>>, %arg7: memref<1x128xf32, #tpu.memory_space<vmem>>, %arg8: memref<8x128xf32, #tpu.memory_space<vmem>>) attributes {dimension_semantics = [#tpu.dimension_semantics<parallel>], iteration_bounds = array<i64: 1>, scalar_prefetch = 0 : i64, scratch_operands = 0 : i64, tpu.core_type = #tpu.core_type<tc>, window_params = [{transform_indices = @transform_0, window_bounds = array<i64: 8, 8>}, {pipeline_mode = #tpu.pipeline_mode<synchronous>, transform_indices = @transform_1, window_bounds = array<i64: 8, 128>}, {pipeline_mode = #tpu.pipeline_mode<synchronous>, transform_indices = @transform_2, window_bounds = array<i64: 1, 128>}, {pipeline_mode = #tpu.pipeline_mode<synchronous>, transform_indices = @transform_3, window_bounds = array<i64: 128, 1024>}, {pipeline_mode = #tpu.pipeline_mode<synchronous>, transform_indices = @transform_4, window_bounds = array<i64: 1, 1024>}, {pipeline_mode = #tpu.pipeline_mode<synchronous>, transform_indices = @transform_5, window_bounds = array<i64: 1024, 128>}, {pipeline_mode = #tpu.pipeline_mode<synchronous>, transform_indices = @transform_6, window_bounds = array<i64: 1, 128>}, {transform_indices = @transform_7, window_bounds = array<i64: 8, 128>}]} {
    %c0 = arith.constant 0 : index
    %c0_0 = arith.constant 0 : index
    %0 = vector.load %arg1[%c0, %c0_0] : memref<8x8xf32, #tpu.memory_space<vmem>>, vector<8x8xf32>
    %c0_1 = arith.constant 0 : index
    %c0_2 = arith.constant 0 : index
    %1 = vector.load %arg2[%c0_1, %c0_2] : memref<8x128xf32, #tpu.memory_space<vmem>>, vector<8x128xf32>
    %cst = arith.constant dense<0.000000e+00> : vector<8x128xf32>
    %2 = tpu.matmul %0, %1, %cst {dimension_numbers = #tpu.dot_dimension_numbers<[1], [0], [0], [1], [0, 0, 1, 1], [], []>} : vector<8x8xf32>, vector<8x128xf32>, vector<8x128xf32> -> vector<8x128xf32>
    %c0_3 = arith.constant 0 : index
    %c0_4 = arith.constant 0 : index
    %3 = vector.load %arg3[%c0_3, %c0_4] : memref<1x128xf32, #tpu.memory_space<vmem>>, vector<1x128xf32>
    %4 = vector.broadcast %3 : vector<1x128xf32> to vector<8x128xf32>
    %5 = arith.addf %2, %4 : vector<8x128xf32>
    %cst_5 = arith.constant 0.000000e+00 : f32
    %6 = vector.broadcast %cst_5 : f32 to vector<8x128xf32>
    %7 = arith.maximumf %5, %6 : vector<8x128xf32>
    %8 = arith.truncf %7 : vector<8x128xf32> to vector<8x128xbf16>
    %c0_6 = arith.constant 0 : index
    %c0_7 = arith.constant 0 : index
    %9 = vector.load %arg4[%c0_6, %c0_7] : memref<128x1024xbf16, #tpu.memory_space<vmem>>, vector<128x1024xbf16>
    %cst_8 = arith.constant dense<0.000000e+00> : vector<8x1024xf32>
    %10 = tpu.matmul %8, %9, %cst_8 {dimension_numbers = #tpu.dot_dimension_numbers<[1], [0], [0], [1], [0, 0, 1, 1], [], []>} : vector<8x128xbf16>, vector<128x1024xbf16>, vector<8x1024xf32> -> vector<8x1024xf32>
    %c0_9 = arith.constant 0 : index
    %c0_10 = arith.constant 0 : index
    %11 = vector.load %arg5[%c0_9, %c0_10] : memref<1x1024xf32, #tpu.memory_space<vmem>>, vector<1x1024xf32>
    %12 = vector.broadcast %11 : vector<1x1024xf32> to vector<8x1024xf32>
    %13 = arith.addf %10, %12 : vector<8x1024xf32>
    %cst_11 = arith.constant 0.000000e+00 : f32
    %14 = vector.broadcast %cst_11 : f32 to vector<8x1024xf32>
    %15 = arith.maximumf %13, %14 : vector<8x1024xf32>
    %16 = arith.truncf %15 : vector<8x1024xf32> to vector<8x1024xbf16>
    %c0_12 = arith.constant 0 : index
    %c0_13 = arith.constant 0 : index
    %17 = vector.load %arg6[%c0_12, %c0_13] : memref<1024x128xbf16, #tpu.memory_space<vmem>>, vector<1024x128xbf16>
    %cst_14 = arith.constant dense<0.000000e+00> : vector<8x128xf32>
    %18 = tpu.matmul %16, %17, %cst_14 {dimension_numbers = #tpu.dot_dimension_numbers<[1], [0], [0], [1], [0, 0, 1, 1], [], []>} : vector<8x1024xbf16>, vector<1024x128xbf16>, vector<8x128xf32> -> vector<8x128xf32>
    %c0_15 = arith.constant 0 : index
    %c0_16 = arith.constant 0 : index
    %19 = vector.load %arg7[%c0_15, %c0_16] : memref<1x128xf32, #tpu.memory_space<vmem>>, vector<1x128xf32>
    %20 = vector.broadcast %19 : vector<1x128xf32> to vector<8x128xf32>
    %21 = arith.addf %18, %20 : vector<8x128xf32>
    %c0_17 = arith.constant 0 : index
    %c0_18 = arith.constant 0 : index
    %22 = vector.load %arg8[%c0_17, %c0_18] : memref<8x128xf32, #tpu.memory_space<vmem>>, vector<8x128xf32>
    tpu.vector_store %arg8[%c0_17, %c0_18], %21 {strides = array<i32>} : memref<8x128xf32, #tpu.memory_space<vmem>>, vector<8x128xf32>,
    return
  }
  func.func @transform_0(%arg0: i32) -> (i32, i32) {
    %c0_i32 = arith.constant 0 : i32
    %c0_i32_0 = arith.constant 0 : i32
    return %arg0, %c0_i32 : i32, i32
  }
  func.func @transform_1(%arg0: i32) -> (i32, i32) {
    %c0_i32 = arith.constant 0 : i32
    %c0_i32_0 = arith.constant 0 : i32
    %c0_i32_1 = arith.constant 0 : i32
    return %c0_i32, %c0_i32_0 : i32, i32
  }
  func.func @transform_2(%arg0: i32) -> (i32, i32) {
    %c0_i32 = arith.constant 0 : i32
    %c0_i32_0 = arith.constant 0 : i32
    %c0_i32_1 = arith.constant 0 : i32
    return %c0_i32, %c0_i32_0 : i32, i32
  }
  func.func @transform_3(%arg0: i32) -> (i32, i32) {
    %c0_i32 = arith.constant 0 : i32
    %c0_i32_0 = arith.constant 0 : i32
    %c0_i32_1 = arith.constant 0 : i32
    return %c0_i32, %c0_i32_0 : i32, i32
  }
  func.func @transform_4(%arg0: i32) -> (i32, i32) {
    %c0_i32 = arith.constant 0 : i32
    %c0_i32_0 = arith.constant 0 : i32
    %c0_i32_1 = arith.constant 0 : i32
    return %c0_i32, %c0_i32_0 : i32, i32
  }
  func.func @transform_5(%arg0: i32) -> (i32, i32) {
    %c0_i32 = arith.constant 0 : i32
    %c0_i32_0 = arith.constant 0 : i32
    %c0_i32_1 = arith.constant 0 : i32
    return %c0_i32, %c0_i32_0 : i32, i32
  }
  func.func @transform_6(%arg0: i32) -> (i32, i32) {
    %c0_i32 = arith.constant 0 : i32
    %c0_i32_0 = arith.constant 0 : i32
    %c0_i32_1 = arith.constant 0 : i32
    return %c0_i32, %c0_i32_0 : i32, i32
  }
  func.func @transform_7(%arg0: i32) -> (i32, i32) {
    %c0_i32 = arith.constant 0 : i32
    %c0_i32_0 = arith.constant 0 : i32
    return %arg0, %c0_i32 : i32, i32
  }
}

module attributes {stable_mosaic.version = 11 : i64} {
  func.func @_dqn_kernel(%arg0: i32, %arg1: memref<8x8xf32, #tpu.memory_space<vmem>>, %arg2: memref<8x128xf32, #tpu.memory_space<vmem>>, %arg3: memref<1x128xf32, #tpu.memory_space<vmem>>, %arg4: memref<128x1024xbf16, #tpu.memory_space<vmem>>, %arg5: memref<1x1024xf32, #tpu.memory_space<vmem>>, %arg6: memref<1024x128xbf16, #tpu.memory_space<vmem>>, %arg7: memref<1x128xf32, #tpu.memory_space<vmem>>, %arg8: memref<8x128xf32, #tpu.memory_space<vmem>>) attributes {dimension_semantics = [#tpu.dimension_semantics<parallel>], iteration_bounds = array<i64: 1>, scalar_prefetch = 0 : i64, scratch_operands = 0 : i64, tpu.core_type = #tpu.core_type<tc>, window_params = [{transform_indices = @transform_0, window_bounds = array<i64: 8, 8>}, {pipeline_mode = #tpu.pipeline_mode<synchronous>, transform_indices = @transform_1, window_bounds = array<i64: 8, 128>}, {pipeline_mode = #tpu.pipeline_mode<synchronous>, transform_indices = @transform_2, window_bounds = array<i64: 1, 128>}, {pipeline_mode = #tpu.pipeline_mode<synchronous>, transform_indices = @transform_3, window_bounds = array<i64: 128, 1024>}, {pipeline_mode = #tpu.pipeline_mode<synchronous>, transform_indices = @transform_4, window_bounds = array<i64: 1, 1024>}, {pipeline_mode = #tpu.pipeline_mode<synchronous>, transform_indices = @transform_5, window_bounds = array<i64: 1024, 128>}, {pipeline_mode = #tpu.pipeline_mode<synchronous>, transform_indices = @transform_6, window_bounds = array<i64: 1, 128>}, {transform_indices = @transform_7, window_bounds = array<i64: 8, 128>}]} {
    %c0 = arith.constant 0 : index
    %c0_0 = arith.constant 0 : index
    %0 = vector.load %arg1[%c0, %c0_0] : memref<8x8xf32, #tpu.memory_space<vmem>>, vector<8x8xf32>
    %c0_1 = arith.constant 0 : index
    %c0_2 = arith.constant 0 : index
    %1 = vector.load %arg2[%c0_1, %c0_2] : memref<8x128xf32, #tpu.memory_space<vmem>>, vector<8x128xf32>
    %cst = arith.constant dense<0.000000e+00> : vector<8x128xf32>
    %2 = tpu.matmul %0, %1, %cst {dimension_numbers = #tpu.dot_dimension_numbers<[1], [0], [0], [1], [0, 0, 1, 1], [], []>} : vector<8x8xf32>, vector<8x128xf32>, vector<8x128xf32> -> vector<8x128xf32>
    %c0_3 = arith.constant 0 : index
    %c0_4 = arith.constant 0 : index
    %3 = vector.load %arg3[%c0_3, %c0_4] : memref<1x128xf32, #tpu.memory_space<vmem>>, vector<1x128xf32>
    %4 = vector.broadcast %3 : vector<1x128xf32> to vector<8x128xf32>
    %5 = arith.addf %2, %4 : vector<8x128xf32>
    %cst_5 = arith.constant 0.000000e+00 : f32
    %6 = vector.broadcast %cst_5 : f32 to vector<8x128xf32>
    %7 = arith.maximumf %5, %6 : vector<8x128xf32>
    %8 = arith.truncf %7 : vector<8x128xf32> to vector<8x128xbf16>
    %c0_6 = arith.constant 0 : index
    %c0_7 = arith.constant 0 : index
    %9 = vector.load %arg4[%c0_6, %c0_7] : memref<128x1024xbf16, #tpu.memory_space<vmem>>, vector<128x1024xbf16>
    %cst_8 = arith.constant dense<0.000000e+00> : vector<8x1024xf32>
    %10 = tpu.matmul %8, %9, %cst_8 {dimension_numbers = #tpu.dot_dimension_numbers<[1], [0], [0], [1], [0, 0, 1, 1], [], []>} : vector<8x128xbf16>, vector<128x1024xbf16>, vector<8x1024xf32> -> vector<8x1024xf32>
    %c0_9 = arith.constant 0 : index
    %c0_10 = arith.constant 0 : index
    %11 = vector.load %arg5[%c0_9, %c0_10] : memref<1x1024xf32, #tpu.memory_space<vmem>>, vector<1x1024xf32>
    %12 = vector.broadcast %11 : vector<1x1024xf32> to vector<8x1024xf32>
    %13 = arith.addf %10, %12 : vector<8x1024xf32>
    %cst_11 = arith.constant 0.000000e+00 : f32
    %14 = vector.broadcast %cst_11 : f32 to vector<8x1024xf32>
    %15 = arith.maximumf %13, %14 : vector<8x1024xf32>
    %16 = arith.truncf %15 : vector<8x1024xf32> to vector<8x1024xbf16>
    %c0_12 = arith.constant 0 : index
    %c0_13 = arith.constant 0 : index
    %17 = vector.load %arg6[%c0_12, %c0_13] : memref<1024x128xbf16, #tpu.memory_space<vmem>>, vector<1024x128xbf16>
    %cst_14 = arith.constant dense<0.000000e+00> : vector<8x128xf32>
    %18 = tpu.matmul %16, %17, %cst_14 {dimension_numbers = #tpu.dot_dimension_numbers<[1], [0], [0], [1], [0, 0, 1, 1], [], []>} : vector<8x1024xbf16>, vector<1024x128xbf16>, vector<8x128xf32> -> vector<8x128xf32>
    %c0_15 = arith.constant 0 : index
    %c0_16 = arith.constant 0 : index
    %19 = vector.load %arg7[%c0_15, %c0_16] : memref<1x128xf32, #tpu.memory_space<vmem>>, vector<1x128xf32>
    %20 = vector.broadcast %19 : vector<1x128xf32> to vector<8x128xf32>
    %21 = arith.addf %18, %20 : vector<8x128xf32>
    %c0_17 = arith.constant 0 : index
    %c0_18 = arith.constant 0 : index
    %22 = vector.load %arg8[%c0_17, %c0_18] : memref<8x128xf32, #tpu.memory_space<vmem>>, vector<8x128xf32>
    tpu.vector_store %arg8[%c0_17, %c0_18], %21 {strides = array<i32>} : memref<8x128xf32, #tpu.memory_space<vmem>>, vector<8x128xf32>,
    return
  }
  func.func @transform_0(%arg0: i32) -> (i32, i32) {
    %c0_i32 = arith.constant 0 : i32
    %c0_i32_0 = arith.constant 0 : i32
    return %arg0, %c0_i32 : i32, i32
  }
  func.func @transform_1(%arg0: i32) -> (i32, i32) {
    %c0_i32 = arith.constant 0 : i32
    %c0_i32_0 = arith.constant 0 : i32
    %c0_i32_1 = arith.constant 0 : i32
    return %c0_i32, %c0_i32_0 : i32, i32
  }
  func.func @transform_2(%arg0: i32) -> (i32, i32) {
    %c0_i32 = arith.constant 0 : i32
    %c0_i32_0 = arith.constant 0 : i32
    %c0_i32_1 = arith.constant 0 : i32
    return %c0_i32, %c0_i32_0 : i32, i32
  }
  func.func @transform_3(%arg0: i32) -> (i32, i32) {
    %c0_i32 = arith.constant 0 : i32
    %c0_i32_0 = arith.constant 0 : i32
    %c0_i32_1 = arith.constant 0 : i32
    return %c0_i32, %c0_i32_0 : i32, i32
  }
  func.func @transform_4(%arg0: i32) -> (i32, i32) {
    %c0_i32 = arith.constant 0 : i32
    %c0_i32_0 = arith.constant 0 : i32
    %c0_i32_1 = arith.constant 0 : i32
    return %c0_i32, %c0_i32_0 : i32, i32
  }
  func.func @transform_5(%arg0: i32) -> (i32, i32) {
    %c0_i32 = arith.constant 0 : i32
    %c0_i32_0 = arith.constant 0 : i32
    %c0_i32_1 = arith.constant 0 : i32
    return %c0_i32, %c0_i32_0 : i32, i32
  }
  func.func @transform_6(%arg0: i32) -> (i32, i32) {
    %c0_i32 = arith.constant 0 : i32
    %c0_i32_0 = arith.constant 0 : i32
    %c0_i32_1 = arith.constant 0 : i32
    return %c0_i32, %c0_i32_0 : i32, i32
  }
  func.func @transform_7(%arg0: i32) -> (i32, i32) {
    %c0_i32 = arith.constant 0 : i32
    %c0_i32_0 = arith.constant 0 : i32
    return %arg0, %c0_i32 : i32, i32
  }
}

</mosaic_0001>

<llo_original>
// kernel: tpu_custom_call.1
$region0: #{tpu_custom_call.1}
  #allocation0 [shape = 'u32[]', space=smem, size = 0x4, offset = 0x4, fixed_abs, tag = 'smem constant byte address 0x4 - core index']
  #allocation1 [shape = 'u32[144,128]{1,0:T(1,128)}', space=vmem, size = 0x12000, scoped, tag = 'internal scratch']
  %s0 = inlined_call_operand.hbm [shape: f32[8,8], index: 0, kind: input, shape index: {}]
  %s1 = inlined_call_operand.hbm [shape: f32[8,128], index: 1, kind: input, shape index: {}]
  %s2 = inlined_call_operand.vmem [shape: f32[1,128], index: 2, kind: input, shape index: {}]
  %s3 = inlined_call_operand.hbm [shape: bf16[128,1024], index: 3, kind: input, shape index: {}]
  %s4 = inlined_call_operand.vmem [shape: f32[1,1024], index: 4, kind: input, shape index: {}]
  %s5 = inlined_call_operand.hbm [shape: bf16[1024,128], index: 5, kind: input, shape index: {}]
  %s6 = inlined_call_operand.vmem [shape: f32[1,128], index: 6, kind: input, shape index: {}]
  %s7 = inlined_call_operand.hbm [shape: f32[8,128], index: 7, kind: output, shape index: {}]
  %s8 = sld [smem:[#allocation0]]
  $region54: #{tpu_custom_call.1} parent=0
    _
  %s10 = ssub.s32 1, %s8
  %s11 = scalar_select 0, %s10, %s8
  $region1: #{tpu_custom_call.1} parent=0
    #allocation2 [shape = 'u8[4096]{0}', space=vmem, size = 0x1000, scoped, tag = 'input window, operand 0, single buffered']
    #allocation3 [shape = 's32[1]{0}', space=sflag, size = 0x4, scoped, tag = 'scoped memory for tpu_custom_call.1']
    #allocation4 [shape = 's32[1]{0}', space=sflag, size = 0x4, scoped, tag = 'scoped memory for tpu_custom_call.1']
    #allocation5 [shape = 'u8[4096]{0}', space=vmem, size = 0x1000, scoped, tag = 'input window, operand 1, single buffered']
    #allocation6 [shape = 's32[1]{0}', space=sflag, size = 0x4, scoped, tag = 'scoped memory for tpu_custom_call.1']
    #allocation7 [shape = 'u8[262144]{0}', space=vmem, size = 0x40000, scoped, tag = 'input window, operand 3, single buffered']
    #allocation8 [shape = 'u8[262144]{0}', space=vmem, size = 0x40000, scoped, tag = 'input window, operand 5, single buffered']
    #allocation9 [shape = 's32[1]{0}', space=sflag, size = 0x4, scoped, tag = 'scoped memory for tpu_custom_call.1']
    #allocation10 [shape = 'u8[4096]{0}', space=vmem, size = 0x1000, scoped, tag = 'output window, operand 0, single buffered']
    %12 = vsyncpa [#allocation3], 0
    %13 = vsyncpa [#allocation6], 0
    %14 = vsyncpa [#allocation9], 0
    %15 = vsyncpa [#allocation4], 0
    // Predicated region
    $region2: #{tpu_custom_call.1} parent=1 // pred_check
      _
    $region3: #{tpu_custom_call.1} parent=1 // pred_check_branch
      %17 = sbr.rel (0) target = $region5
    $region4: #{tpu_custom_call.1} parent=1 // pred_region
      %s19 = ssub.s32 128, 128
      %20 = vsyncadd [#allocation3], %s19
      %s22 = sshll.u32 [#allocation2], 4
      %s23 = int_to_ptr.vmem [resolvable:$true] %s22
      %25 = dma.hbm_to_vmem [thread:$0]  %s0, 128, %s23, [#allocation3]
    $region5: #{tpu_custom_call.1} parent=1 // pred_fallthru
      _
    // Predicated region
    $region6: #{tpu_custom_call.1} parent=1 // pred_check
      _
    $region7: #{tpu_custom_call.1} parent=1 // pred_check_branch
      %27 = sbr.rel (0) target = $region9
    $region8: #{tpu_custom_call.1} parent=1 // pred_region
      %s29 = ssub.s32 128, 128
      %30 = vsyncadd [#allocation6], %s29
      %s32 = sshll.u32 [#allocation5], 4
      %s33 = int_to_ptr.vmem [resolvable:$true] %s32
      %35 = dma.hbm_to_vmem [thread:$0]  %s1, 128, %s33, [#allocation6]
    $region9: #{tpu_custom_call.1} parent=1 // pred_fallthru
      _
    // Predicated region
    $region10: #{tpu_custom_call.1} parent=1 // pred_check
      _
    $region11: #{tpu_custom_call.1} parent=1 // pred_check_branch
      %37 = sbr.rel (0) target = $region13
    $region12: #{tpu_custom_call.1} parent=1 // pred_region
      _
    $region13: #{tpu_custom_call.1} parent=1 // pred_fallthru
      _
    // Predicated region
    $region14: #{tpu_custom_call.1} parent=1 // pred_check
      _
    $region15: #{tpu_custom_call.1} parent=1 // pred_check_branch
      %39 = sbr.rel (0) target = $region17
    $region16: #{tpu_custom_call.1} parent=1 // pred_region
      %s41 = ssub.s32 8192, 8192
      %42 = vsyncadd [#allocation6], %s41
      %s43 = sshll.u32 [#allocation7], 4
      %s44 = int_to_ptr.vmem [resolvable:$true] %s43
      %49 = dma.hbm_to_vmem [thread:$0]  %s3, 8192, %s44, [#allocation6], 512, 512, 32
    $region17: #{tpu_custom_call.1} parent=1 // pred_fallthru
      _
    // Predicated region
    $region18: #{tpu_custom_call.1} parent=1 // pred_check
      _
    $region19: #{tpu_custom_call.1} parent=1 // pred_check_branch
      %51 = sbr.rel (0) target = $region21
    $region20: #{tpu_custom_call.1} parent=1 // pred_region
      _
    $region21: #{tpu_custom_call.1} parent=1 // pred_fallthru
      _
    // Predicated region
    $region22: #{tpu_custom_call.1} parent=1 // pred_check
      _
    $region23: #{tpu_custom_call.1} parent=1 // pred_check_branch
      %53 = sbr.rel (0) target = $region25
    $region24: #{tpu_custom_call.1} parent=1 // pred_region
      %s55 = ssub.s32 8192, 8192
      %56 = vsyncadd [#allocation9], %s55
      %s57 = sshll.u32 [#allocation8], 4
      %s58 = int_to_ptr.vmem [resolvable:$true] %s57
      %63 = dma.hbm_to_vmem [thread:$0]  %s5, 8192, %s58, [#allocation9], 64, 64, 4
    $region25: #{tpu_custom_call.1} parent=1 // pred_fallthru
      _
    // Predicated region
    $region26: #{tpu_custom_call.1} parent=1 // pred_check
      _
    $region27: #{tpu_custom_call.1} parent=1 // pred_check_branch
      %65 = sbr.rel (0) target = $region29
    $region28: #{tpu_custom_call.1} parent=1 // pred_region
      _
    $region29: #{tpu_custom_call.1} parent=1 // pred_fallthru
      _
    // Predicated region
    $region30: #{tpu_custom_call.1} parent=1 // pred_check
      _
    $region31: #{tpu_custom_call.1} parent=1 // pred_check_branch
      %67 = sbr.rel (0) target = $region33
    $region32: #{tpu_custom_call.1} parent=1 // pred_region
      %68 = dma.done [#allocation3], 128
    $region33: #{tpu_custom_call.1} parent=1 // pred_fallthru
      _
    // Predicated region
    $region34: #{tpu_custom_call.1} parent=1 // pred_check
      _
    $region35: #{tpu_custom_call.1} parent=1 // pred_check_branch
      %70 = sbr.rel (0) target = $region37
    $region36: #{tpu_custom_call.1} parent=1 // pred_region
      %71 = dma.done [#allocation6], 128
    $region37: #{tpu_custom_call.1} parent=1 // pred_fallthru
      _
    // Predicated region
    $region38: #{tpu_custom_call.1} parent=1 // pred_check
      _
    $region39: #{tpu_custom_call.1} parent=1 // pred_check_branch
      %73 = sbr.rel (0) target = $region41
    $region40: #{tpu_custom_call.1} parent=1 // pred_region
      %74 = dma.done [#allocation6], 8192
    $region41: #{tpu_custom_call.1} parent=1 // pred_fallthru
      _
    // Predicated region
    $region42: #{tpu_custom_call.1} parent=1 // pred_check
      _
    $region43: #{tpu_custom_call.1} parent=1 // pred_check_branch
      %76 = sbr.rel (0) target = $region45
    $region44: #{tpu_custom_call.1} parent=1 // pred_region
      %77 = dma.done [#allocation9], 8192
    $region45: #{tpu_custom_call.1} parent=1 // pred_fallthru
      _
    %v79 = vld [vmem:[#allocation2] sm:$0xff]
    %v80 = vld [vmem:[#allocation5] sm:$0xff]
    %v81 = vld [vmem:[%s2] sm:$0x1]
    %v83 = vlaneseq
    %v84 = vshrl.u32 %v83, 7
    %v85 = vsub.s32 0, %v84
    %v86 = vrot.slane %v81, %v85
    %vm88 = vcmask 64512
    %v90 = vsel %vm88, %v79, 0
    %92 = vmatprep.subr.mxu0 0.0
    %93 = vmatpush1.msra.mxu0 %v80
    %94 = vmatprep.subr.mxu0 0.0
    %95 = vmatpush1.msra.mxu0 0.0
    %96 = vmatprep.subr.mxu0 0.0
    %97 = vmatpush1.msra.mxu0 0.0
    %98 = vmatprep.subr.mxu0 0.0
    %99 = vmatpush1.msra.mxu0 0.0
    %100 = vmatprep.subr.mxu0 0.0
    %101 = vmatpush1.msra.mxu0 0.0
    %102 = vmatprep.subr.mxu0 0.0
    %103 = vmatpush1.msra.mxu0 0.0
    %104 = vmatprep.subr.mxu0 0.0
    %105 = vmatpush1.msra.mxu0 0.0
    %106 = vmatprep.subr.mxu0 0.0
    %107 = vmatpush1.msra.mxu0 0.0
    %108 = vmatprep.subr.mxu0 0.0
    %109 = vmatpush1.msra.mxu0 0.0
    %110 = vmatprep.subr.mxu0 0.0
    %111 = vmatpush1.msra.mxu0 0.0
    %112 = vmatprep.subr.mxu0 0.0
    %113 = vmatpush1.msra.mxu0 0.0
    %114 = vmatprep.subr.mxu0 0.0
    %115 = vmatpush1.msra.mxu0 0.0
    %116 = vmatprep.subr.mxu0 0.0
    %117 = vmatpush1.msra.mxu0 0.0
    %118 = vmatprep.subr.mxu0 0.0
    %119 = vmatpush1.msra.mxu0 0.0
    %120 = vmatprep.subr.mxu0 0.0
    %121 = vmatpush1.msra.mxu0 0.0
    %122 = vmatprep.subr.mxu0 0.0
    %123 = vmatpush1.msra.mxu0 0.0
    %124 = vmatprep.subr.mxu0 0.0
    %125 = vmatpush1.msra.mxu0 0.0
    %126 = vmatprep.subr.mxu0 0.0
    %127 = vmatpush1.msra.mxu0 0.0
    %128 = vmatprep.subr.mxu0 0.0
    %129 = vmatpush1.msra.mxu0 0.0
    %130 = vmatprep.subr.mxu0 0.0
    %131 = vmatpush1.msra.mxu0 0.0
    %132 = vmatprep.subr.mxu0 0.0
    %133 = vmatpush1.msra.mxu0 0.0
    %134 = vmatprep.subr.mxu0 0.0
    %135 = vmatpush1.msra.mxu0 0.0
    %136 = vmatprep.subr.mxu0 0.0
    %137 = vmatpush1.msra.mxu0 0.0
    %138 = vmatprep.subr.mxu0 0.0
    %139 = vmatpush1.msra.mxu0 0.0
    %140 = vmatprep.subr.mxu0 0.0
    %141 = vmatpush1.msra.mxu0 0.0
    %142 = vmatprep.subr.mxu0 0.0
    %143 = vmatpush1.msra.mxu0 0.0
    %144 = vmatprep.subr.mxu0 0.0
    %145 = vmatpush1.msra.mxu0 0.0
    %146 = vmatprep.subr.mxu0 0.0
    %147 = vmatpush1.msra.mxu0 0.0
    %148 = vmatprep.subr.mxu0 0.0
    %149 = vmatpush1.msra.mxu0 0.0
    %150 = vmatprep.subr.mxu0 0.0
    %151 = vmatpush1.msra.mxu0 0.0
    %152 = vmatprep.subr.mxu0 0.0
    %153 = vmatpush1.msra.mxu0 0.0
    %154 = vmatprep.subr.mxu0 0.0
    %155 = vmatpush1.msra.mxu0 0.0
    %156 = vmatprep.mubr.f32.mxu0 0.0
    %157 = vmatmul.mubr.f32.gmra.mrb[0].mxu0 %v90
    %v158 = vpop.f32.mrb[0].mxu0
    %v159 = vadd.f32 %v86, %v158
    %v160 = vpop.f32.mrb[0].mxu0
    %161 = vdwg.mxu0
    %v162 = vmax.f32 %v159, 0.0
    %v163 = vpack.c.bf16 %v162, %v162
    %v164 = vld [vmem:[#allocation7] sm:$0xff]
    %v165 = vld [vmem:[#allocation7 + $0x8] sm:$0xff]
    %v166 = vld [vmem:[#allocation7 + $0x10] sm:$0xff]
    %v167 = vld [vmem:[#allocation7 + $0x18] sm:$0xff]
    %v168 = vld [vmem:[#allocation7 + $0x20] sm:$0xff]
    %v169 = vld [vmem:[#allocation7 + $0x28] sm:$0xff]
    %v170 = vld [vmem:[#allocation7 + $0x30] sm:$0xff]
    %v171 = vld [vmem:[#allocation7 + $0x38] sm:$0xff]
    %v172 = vld [vmem:[#allocation7 + $0x40] sm:$0xff]
    %v173 = vld [vmem:[#allocation7 + $0x48] sm:$0xff]
    %v174 = vld [vmem:[#allocation7 + $0x50] sm:$0xff]
    %v175 = vld [vmem:[#allocation7 + $0x58] sm:$0xff]
    %v176 = vld [vmem:[#allocation7 + $0x60] sm:$0xff]
    %v177 = vld [vmem:[#allocation7 + $0x68] sm:$0xff]
    %v178 = vld [vmem:[#allocation7 + $0x70] sm:$0xff]
    %v179 = vld [vmem:[#allocation7 + $0x78] sm:$0xff]
    %v180 = vld [vmem:[#allocation7 + $0x80] sm:$0xff]
    %v181 = vld [vmem:[#allocation7 + $0x88] sm:$0xff]
    %v182 = vld [vmem:[#allocation7 + $0x90] sm:$0xff]
    %v183 = vld [vmem:[#allocation7 + $0x98] sm:$0xff]
    %v184 = vld [vmem:[#allocation7 + $0xa0] sm:$0xff]
    %v185 = vld [vmem:[#allocation7 + $0xa8] sm:$0xff]
    %v186 = vld [vmem:[#allocation7 + $0xb0] sm:$0xff]
    %v187 = vld [vmem:[#allocation7 + $0xb8] sm:$0xff]
    %v188 = vld [vmem:[#allocation7 + $0xc0] sm:$0xff]
    %v189 = vld [vmem:[#allocation7 + $0xc8] sm:$0xff]
    %v190 = vld [vmem:[#allocation7 + $0xd0] sm:$0xff]
    %v191 = vld [vmem:[#allocation7 + $0xd8] sm:$0xff]
    %v192 = vld [vmem:[#allocation7 + $0xe0] sm:$0xff]
    %v193 = vld [vmem:[#allocation7 + $0xe8] sm:$0xff]
    %v194 = vld [vmem:[#allocation7 + $0xf0] sm:$0xff]
    %v195 = vld [vmem:[#allocation7 + $0xf8] sm:$0xff]
    %v196 = vld [vmem:[#allocation7 + $0x100] sm:$0xff]
    %v197 = vld [vmem:[#allocation7 + $0x108] sm:$0xff]
    %v198 = vld [vmem:[#allocation7 + $0x110] sm:$0xff]
    %v199 = vld [vmem:[#allocation7 + $0x118] sm:$0xff]
    %v200 = vld [vmem:[#allocation7 + $0x120] sm:$0xff]
    %v201 = vld [vmem:[#allocation7 + $0x128] sm:$0xff]
    %v202 = vld [vmem:[#allocation7 + $0x130] sm:$0xff]
    %v203 = vld [vmem:[#allocation7 + $0x138] sm:$0xff]
    %v204 = vld [vmem:[#allocation7 + $0x140] sm:$0xff]
    %v205 = vld [vmem:[#allocation7 + $0x148] sm:$0xff]
    %v206 = vld [vmem:[#allocation7 + $0x150] sm:$0xff]
    %v207 = vld [vmem:[#allocation7 + $0x158] sm:$0xff]
    %v208 = vld [vmem:[#allocation7 + $0x160] sm:$0xff]
    %v209 = vld [vmem:[#allocation7 + $0x168] sm:$0xff]
    %v210 = vld [vmem:[#allocation7 + $0x170] sm:$0xff]
    %v211 = vld [vmem:[#allocation7 + $0x178] sm:$0xff]
    %v212 = vld [vmem:[#allocation7 + $0x180] sm:$0xff]
    %v213 = vld [vmem:[#allocation7 + $0x188] sm:$0xff]
    %v214 = vld [vmem:[#allocation7 + $0x190] sm:$0xff]
    %v215 = vld [vmem:[#allocation7 + $0x198] sm:$0xff]
    %v216 = vld [vmem:[#allocation7 + $0x1a0] sm:$0xff]
    %v217 = vld [vmem:[#allocation7 + $0x1a8] sm:$0xff]
    %v218 = vld [vmem:[#allocation7 + $0x1b0] sm:$0xff]
    %v219 = vld [vmem:[#allocation7 + $0x1b8] sm:$0xff]
    %v220 = vld [vmem:[#allocation7 + $0x1c0] sm:$0xff]
    %v221 = vld [vmem:[#allocation7 + $0x1c8] sm:$0xff]
    %v222 = vld [vmem:[#allocation7 + $0x1d0] sm:$0xff]
    %v223 = vld [vmem:[#allocation7 + $0x1d8] sm:$0xff]
    %v224 = vld [vmem:[#allocation7 + $0x1e0] sm:$0xff]
    %v225 = vld [vmem:[#allocation7 + $0x1e8] sm:$0xff]
    %v226 = vld [vmem:[#allocation7 + $0x1f0] sm:$0xff]
    %v227 = vld [vmem:[#allocation7 + $0x1f8] sm:$0xff]
    %v228 = vld [vmem:[%s4] sm:$0xff]
    %v230 = vlaneseq
    %v231 = vshrl.u32 %v230, 7
    %v232 = vsub.s32 0, %v231
    %v233 = vrot.slane %v228, %v232
    %v234 = vlaneseq
    %v235 = vshrl.u32 %v234, 7
    %v236 = vsub.s32 1, %v235
    %v237 = vrot.slane %v228, %v236
    %v238 = vlaneseq
    %v239 = vshrl.u32 %v238, 7
    %v240 = vsub.s32 2, %v239
    %v241 = vrot.slane %v228, %v240
    %v242 = vlaneseq
    %v243 = vshrl.u32 %v242, 7
    %v244 = vsub.s32 3, %v243
    %v245 = vrot.slane %v228, %v244
    %v246 = vlaneseq
    %v247 = vshrl.u32 %v246, 7
    %v248 = vsub.s32 4, %v247
    %v249 = vrot.slane %v228, %v248
    %v250 = vlaneseq
    %v251 = vshrl.u32 %v250, 7
    %v252 = vsub.s32 5, %v251
    %v253 = vrot.slane %v228, %v252
    %v254 = vlaneseq
    %v255 = vshrl.u32 %v254, 7
    %v256 = vsub.s32 6, %v255
    %v257 = vrot.slane %v228, %v256
    %v258 = vlaneseq
    %v259 = vshrl.u32 %v258, 7
    %v260 = vsub.s32 7, %v259
    %v261 = vrot.slane %v228, %v260
    %v334 = vunpack.c.l.b16 %v164
    %v335 = vunpack.c.h.b16 %v164
    %v336 = vunpack.c.l.b16 %v165
    %v337 = vunpack.c.h.b16 %v165
    %v338 = vunpack.c.l.b16 %v166
    %v339 = vunpack.c.h.b16 %v166
    %v340 = vunpack.c.l.b16 %v167
    %v341 = vunpack.c.h.b16 %v167
    %v342 = vunpack.c.l.b16 %v168
    %v343 = vunpack.c.h.b16 %v168
    %v344 = vunpack.c.l.b16 %v169
    %v345 = vunpack.c.h.b16 %v169
    %v346 = vunpack.c.l.b16 %v170
    %v347 = vunpack.c.h.b16 %v170
    %v348 = vunpack.c.l.b16 %v171
    %v349 = vunpack.c.h.b16 %v171
    %v350 = vunpack.c.l.b16 %v172
    %v351 = vunpack.c.h.b16 %v172
    %v352 = vunpack.c.l.b16 %v173
    %v353 = vunpack.c.h.b16 %v173
    %v354 = vunpack.c.l.b16 %v174
    %v355 = vunpack.c.h.b16 %v174
    %v356 = vunpack.c.l.b16 %v175
    %v357 = vunpack.c.h.b16 %v175
    %v358 = vunpack.c.l.b16 %v176
    %v359 = vunpack.c.h.b16 %v176
    %v360 = vunpack.c.l.b16 %v177
    %v361 = vunpack.c.h.b16 %v177
    %v362 = vunpack.c.l.b16 %v178
    %v363 = vunpack.c.h.b16 %v178
    %v364 = vunpack.c.l.b16 %v179
    %v365 = vunpack.c.h.b16 %v179
    %v366 = vunpack.c.l.b16 %v180
    %v367 = vunpack.c.h.b16 %v180
    %v368 = vunpack.c.l.b16 %v181
    %v369 = vunpack.c.h.b16 %v181
    %v370 = vunpack.c.l.b16 %v182
    %v371 = vunpack.c.h.b16 %v182
    %v372 = vunpack.c.l.b16 %v183
    %v373 = vunpack.c.h.b16 %v183
    %v374 = vunpack.c.l.b16 %v184
    %v375 = vunpack.c.h.b16 %v184
    %v376 = vunpack.c.l.b16 %v185
    %v377 = vunpack.c.h.b16 %v185
    %v378 = vunpack.c.l.b16 %v186
    %v379 = vunpack.c.h.b16 %v186
    %v380 = vunpack.c.l.b16 %v187
    %v381 = vunpack.c.h.b16 %v187
    %v382 = vunpack.c.l.b16 %v188
    %v383 = vunpack.c.h.b16 %v188
    %v384 = vunpack.c.l.b16 %v189
    %v385 = vunpack.c.h.b16 %v189
    %v386 = vunpack.c.l.b16 %v190
    %v387 = vunpack.c.h.b16 %v190
    %v388 = vunpack.c.l.b16 %v191
    %v389 = vunpack.c.h.b16 %v191
    %v390 = vunpack.c.l.b16 %v192
    %v391 = vunpack.c.h.b16 %v192
    %v392 = vunpack.c.l.b16 %v193
    %v393 = vunpack.c.h.b16 %v193
    %v394 = vunpack.c.l.b16 %v194
    %v395 = vunpack.c.h.b16 %v194
    %v396 = vunpack.c.l.b16 %v195
    %v397 = vunpack.c.h.b16 %v195
    %v398 = vunpack.c.l.b16 %v196
    %v399 = vunpack.c.h.b16 %v196
    %v400 = vunpack.c.l.b16 %v197
    %v401 = vunpack.c.h.b16 %v197
    %v402 = vunpack.c.l.b16 %v198
    %v403 = vunpack.c.h.b16 %v198
    %v404 = vunpack.c.l.b16 %v199
    %v405 = vunpack.c.h.b16 %v199
    %v406 = vunpack.c.l.b16 %v200
    %v407 = vunpack.c.h.b16 %v200
    %v408 = vunpack.c.l.b16 %v201
    %v409 = vunpack.c.h.b16 %v201
    %v410 = vunpack.c.l.b16 %v202
    %v411 = vunpack.c.h.b16 %v202
    %v412 = vunpack.c.l.b16 %v203
    %v413 = vunpack.c.h.b16 %v203
    %v414 = vunpack.c.l.b16 %v204
    %v415 = vunpack.c.h.b16 %v204
    %v416 = vunpack.c.l.b16 %v205
    %v417 = vunpack.c.h.b16 %v205
    %v418 = vunpack.c.l.b16 %v206
    %v419 = vunpack.c.h.b16 %v206
    %v420 = vunpack.c.l.b16 %v207
    %v421 = vunpack.c.h.b16 %v207
    %v422 = vunpack.c.l.b16 %v208
    %v423 = vunpack.c.h.b16 %v208
    %v424 = vunpack.c.l.b16 %v209
    %v425 = vunpack.c.h.b16 %v209
    %v426 = vunpack.c.l.b16 %v210
    %v427 = vunpack.c.h.b16 %v210
    %v428 = vunpack.c.l.b16 %v211
    %v429 = vunpack.c.h.b16 %v211
    %v430 = vunpack.c.l.b16 %v212
    %v431 = vunpack.c.h.b16 %v212
    %v432 = vunpack.c.l.b16 %v213
    %v433 = vunpack.c.h.b16 %v213
    %v434 = vunpack.c.l.b16 %v214
    %v435 = vunpack.c.h.b16 %v214
    %v436 = vunpack.c.l.b16 %v215
    %v437 = vunpack.c.h.b16 %v215
    %v438 = vunpack.c.l.b16 %v216
    %v439 = vunpack.c.h.b16 %v216
    %v440 = vunpack.c.l.b16 %v217
    %v441 = vunpack.c.h.b16 %v217
    %v442 = vunpack.c.l.b16 %v218
    %v443 = vunpack.c.h.b16 %v218
    %v444 = vunpack.c.l.b16 %v219
    %v445 = vunpack.c.h.b16 %v219
    %v446 = vunpack.c.l.b16 %v220
    %v447 = vunpack.c.h.b16 %v220
    %v448 = vunpack.c.l.b16 %v221
    %v449 = vunpack.c.h.b16 %v221
    %v450 = vunpack.c.l.b16 %v222
    %v451 = vunpack.c.h.b16 %v222
    %v452 = vunpack.c.l.b16 %v223
    %v453 = vunpack.c.h.b16 %v223
    %v454 = vunpack.c.l.b16 %v224
    %v455 = vunpack.c.h.b16 %v224
    %v456 = vunpack.c.l.b16 %v225
    %v457 = vunpack.c.h.b16 %v225
    %v458 = vunpack.c.l.b16 %v226
    %v459 = vunpack.c.h.b16 %v226
    %v460 = vunpack.c.l.b16 %v227
    %v461 = vunpack.c.h.b16 %v227
    %v462 = vpack.c.b16 %v342, %v334
    %v463 = vpack.c.b16 %v343, %v335
    %v464 = vpack.c.b16 %v344, %v336
    %v465 = vpack.c.b16 %v345, %v337
    %v466 = vpack.c.b16 %v346, %v338
    %v467 = vpack.c.b16 %v347, %v339
    %v468 = vpack.c.b16 %v348, %v340
    %v469 = vpack.c.b16 %v349, %v341
    %v470 = vpack.c.b16 %v358, %v350
    %v471 = vpack.c.b16 %v359, %v351
    %v472 = vpack.c.b16 %v360, %v352
    %v473 = vpack.c.b16 %v361, %v353
    %v474 = vpack.c.b16 %v362, %v354
    %v475 = vpack.c.b16 %v363, %v355
    %v476 = vpack.c.b16 %v364, %v356
    %v477 = vpack.c.b16 %v365, %v357
    %v478 = vpack.c.b16 %v374, %v366
    %v479 = vpack.c.b16 %v375, %v367
    %v480 = vpack.c.b16 %v376, %v368
    %v481 = vpack.c.b16 %v377, %v369
    %v482 = vpack.c.b16 %v378, %v370
    %v483 = vpack.c.b16 %v379, %v371
    %v484 = vpack.c.b16 %v380, %v372
    %v485 = vpack.c.b16 %v381, %v373
    %v486 = vpack.c.b16 %v390, %v382
    %v487 = vpack.c.b16 %v391, %v383
    %v488 = vpack.c.b16 %v392, %v384
    %v489 = vpack.c.b16 %v393, %v385
    %v490 = vpack.c.b16 %v394, %v386
    %v491 = vpack.c.b16 %v395, %v387
    %v492 = vpack.c.b16 %v396, %v388
    %v493 = vpack.c.b16 %v397, %v389
    %v494 = vpack.c.b16 %v406, %v398
    %v495 = vpack.c.b16 %v407, %v399
    %v496 = vpack.c.b16 %v408, %v400
    %v497 = vpack.c.b16 %v409, %v401
    %v498 = vpack.c.b16 %v410, %v402
    %v499 = vpack.c.b16 %v411, %v403
    %v500 = vpack.c.b16 %v412, %v404
    %v501 = vpack.c.b16 %v413, %v405
    %v502 = vpack.c.b16 %v422, %v414
    %v503 = vpack.c.b16 %v423, %v415
    %v504 = vpack.c.b16 %v424, %v416
    %v505 = vpack.c.b16 %v425, %v417
    %v506 = vpack.c.b16 %v426, %v418
    %v507 = vpack.c.b16 %v427, %v419
    %v508 = vpack.c.b16 %v428, %v420
    %v509 = vpack.c.b16 %v429, %v421
    %v510 = vpack.c.b16 %v438, %v430
    %v511 = vpack.c.b16 %v439, %v431
    %v512 = vpack.c.b16 %v440, %v432
    %v513 = vpack.c.b16 %v441, %v433
    %v514 = vpack.c.b16 %v442, %v434
    %v515 = vpack.c.b16 %v443, %v435
    %v516 = vpack.c.b16 %v444, %v436
    %v517 = vpack.c.b16 %v445, %v437
    %v518 = vpack.c.b16 %v454, %v446
    %v519 = vpack.c.b16 %v455, %v447
    %v520 = vpack.c.b16 %v456, %v448
    %v521 = vpack.c.b16 %v457, %v449
    %v522 = vpack.c.b16 %v458, %v450
    %v523 = vpack.c.b16 %v459, %v451
    %v524 = vpack.c.b16 %v460, %v452
    %v525 = vpack.c.b16 %v461, %v453
    %590 = vmatprep.subr.bf16.mxu0 %v463
    %591 = vmatpush1.bf16.msra.mxu0 %v462
    %592 = vmatprep.subr.bf16.mxu0 %v471
    %593 = vmatpush1.bf16.msra.mxu0 %v470
    %594 = vmatprep.subr.bf16.mxu0 %v479
    %595 = vmatpush1.bf16.msra.mxu0 %v478
    %596 = vmatprep.subr.bf16.mxu0 %v487
    %597 = vmatpush1.bf16.msra.mxu0 %v486
    %598 = vmatprep.subr.bf16.mxu0 %v495
    %599 = vmatpush1.bf16.msra.mxu0 %v494
    %600 = vmatprep.subr.bf16.mxu0 %v503
    %601 = vmatpush1.bf16.msra.mxu0 %v502
    %602 = vmatprep.subr.bf16.mxu0 %v511
    %603 = vmatpush1.bf16.msra.mxu0 %v510
    %604 = vmatprep.subr.bf16.mxu0 %v519
    %605 = vmatpush1.bf16.msra.mxu0 %v518
    %606 = vmatprep.subr.bf16.mxu0 0
    %607 = vmatpush1.bf16.msra.mxu0 0
    %608 = vmatprep.subr.bf16.mxu0 0
    %609 = vmatpush1.bf16.msra.mxu0 0
    %610 = vmatprep.subr.bf16.mxu0 0
    %611 = vmatpush1.bf16.msra.mxu0 0
    %612 = vmatprep.subr.bf16.mxu0 0
    %613 = vmatpush1.bf16.msra.mxu0 0
    %614 = vmatprep.subr.bf16.mxu0 0
    %615 = vmatpush1.bf16.msra.mxu0 0
    %616 = vmatprep.subr.bf16.mxu0 0
    %617 = vmatpush1.bf16.msra.mxu0 0
    %618 = vmatprep.subr.bf16.mxu0 0
    %619 = vmatpush1.bf16.msra.mxu0 0
    %620 = vmatprep.subr.bf16.mxu0 0
    %621 = vmatpush1.bf16.msra.mxu0 0
    %622 = vmatprep.mubr.bf16.mxu0 0
    %623 = vmatmul.mubr.bf16.gmra.mrb[0].mxu0 %v163
    %v624 = vpop.f32.mrb[0].mxu0
    %v625 = vadd.f32 %v233, %v624
    %v626 = vpop.f32.mrb[0].mxu0
    %v627 = vadd.f32 %v237, %v626
    %v628 = vpop.f32.mrb[0].mxu0
    %v629 = vpop.f32.mrb[0].mxu0
    %630 = vdwg.mxu0
    %631 = vmatprep.subr.bf16.mxu0 %v465
    %632 = vmatpush1.bf16.msra.mxu0 %v464
    %633 = vmatprep.subr.bf16.mxu0 %v473
    %634 = vmatpush1.bf16.msra.mxu0 %v472
    %635 = vmatprep.subr.bf16.mxu0 %v481
    %636 = vmatpush1.bf16.msra.mxu0 %v480
    %637 = vmatprep.subr.bf16.mxu0 %v489
    %638 = vmatpush1.bf16.msra.mxu0 %v488
    %639 = vmatprep.subr.bf16.mxu0 %v497
    %640 = vmatpush1.bf16.msra.mxu0 %v496
    %641 = vmatprep.subr.bf16.mxu0 %v505
    %642 = vmatpush1.bf16.msra.mxu0 %v504
    %643 = vmatprep.subr.bf16.mxu0 %v513
    %644 = vmatpush1.bf16.msra.mxu0 %v512
    %645 = vmatprep.subr.bf16.mxu0 %v521
    %646 = vmatpush1.bf16.msra.mxu0 %v520
    %647 = vmatprep.subr.bf16.mxu0 0
    %648 = vmatpush1.bf16.msra.mxu0 0
    %649 = vmatprep.subr.bf16.mxu0 0
    %650 = vmatpush1.bf16.msra.mxu0 0
    %651 = vmatprep.subr.bf16.mxu0 0
    %652 = vmatpush1.bf16.msra.mxu0 0
    %653 = vmatprep.subr.bf16.mxu0 0
    %654 = vmatpush1.bf16.msra.mxu0 0
    %655 = vmatprep.subr.bf16.mxu0 0
    %656 = vmatpush1.bf16.msra.mxu0 0
    %657 = vmatprep.subr.bf16.mxu0 0
    %658 = vmatpush1.bf16.msra.mxu0 0
    %659 = vmatprep.subr.bf16.mxu0 0
    %660 = vmatpush1.bf16.msra.mxu0 0
    %661 = vmatprep.subr.bf16.mxu0 0
    %662 = vmatpush1.bf16.msra.mxu0 0
    %663 = vmatprep.mubr.bf16.mxu0 0
    %664 = vmatmul.mubr.bf16.gmra.mrb[0].mxu0 %v163
    %v665 = vpop.f32.mrb[0].mxu0
    %v666 = vadd.f32 %v241, %v665
    %v667 = vpop.f32.mrb[0].mxu0
    %v668 = vadd.f32 %v245, %v667
    %v669 = vpop.f32.mrb[0].mxu0
    %v670 = vpop.f32.mrb[0].mxu0
    %671 = vdwg.mxu0
    %672 = vmatprep.subr.bf16.mxu0 %v467
    %673 = vmatpush1.bf16.msra.mxu0 %v466
    %674 = vmatprep.subr.bf16.mxu0 %v475
    %675 = vmatpush1.bf16.msra.mxu0 %v474
    %676 = vmatprep.subr.bf16.mxu0 %v483
    %677 = vmatpush1.bf16.msra.mxu0 %v482
    %678 = vmatprep.subr.bf16.mxu0 %v491
    %679 = vmatpush1.bf16.msra.mxu0 %v490
    %680 = vmatprep.subr.bf16.mxu0 %v499
    %681 = vmatpush1.bf16.msra.mxu0 %v498
    %682 = vmatprep.subr.bf16.mxu0 %v507
    %683 = vmatpush1.bf16.msra.mxu0 %v506
    %684 = vmatprep.subr.bf16.mxu0 %v515
    %685 = vmatpush1.bf16.msra.mxu0 %v514
    %686 = vmatprep.subr.bf16.mxu0 %v523
    %687 = vmatpush1.bf16.msra.mxu0 %v522
    %688 = vmatprep.subr.bf16.mxu0 0
    %689 = vmatpush1.bf16.msra.mxu0 0
    %690 = vmatprep.subr.bf16.mxu0 0
    %691 = vmatpush1.bf16.msra.mxu0 0
    %692 = vmatprep.subr.bf16.mxu0 0
    %693 = vmatpush1.bf16.msra.mxu0 0
    %694 = vmatprep.subr.bf16.mxu0 0
    %695 = vmatpush1.bf16.msra.mxu0 0
    %696 = vmatprep.subr.bf16.mxu0 0
    %697 = vmatpush1.bf16.msra.mxu0 0
    %698 = vmatprep.subr.bf16.mxu0 0
    %699 = vmatpush1.bf16.msra.mxu0 0
    %700 = vmatprep.subr.bf16.mxu0 0
    %701 = vmatpush1.bf16.msra.mxu0 0
    %702 = vmatprep.subr.bf16.mxu0 0
    %703 = vmatpush1.bf16.msra.mxu0 0
    %704 = vmatprep.mubr.bf16.mxu0 0
    %705 = vmatmul.mubr.bf16.gmra.mrb[0].mxu0 %v163
    %v706 = vpop.f32.mrb[0].mxu0
    %v707 = vadd.f32 %v249, %v706
    %v708 = vpop.f32.mrb[0].mxu0
    %v709 = vadd.f32 %v253, %v708
    %v710 = vpop.f32.mrb[0].mxu0
    %v711 = vpop.f32.mrb[0].mxu0
    %712 = vdwg.mxu0
    %713 = vmatprep.subr.bf16.mxu0 %v469
    %714 = vmatpush1.bf16.msra.mxu0 %v468
    %715 = vmatprep.subr.bf16.mxu0 %v477
    %716 = vmatpush1.bf16.msra.mxu0 %v476
    %717 = vmatprep.subr.bf16.mxu0 %v485
    %718 = vmatpush1.bf16.msra.mxu0 %v484
    %719 = vmatprep.subr.bf16.mxu0 %v493
    %720 = vmatpush1.bf16.msra.mxu0 %v492
    %721 = vmatprep.subr.bf16.mxu0 %v501
    %722 = vmatpush1.bf16.msra.mxu0 %v500
    %723 = vmatprep.subr.bf16.mxu0 %v509
    %724 = vmatpush1.bf16.msra.mxu0 %v508
    %725 = vmatprep.subr.bf16.mxu0 %v517
    %726 = vmatpush1.bf16.msra.mxu0 %v516
    %727 = vmatprep.subr.bf16.mxu0 %v525
    %728 = vmatpush1.bf16.msra.mxu0 %v524
    %729 = vmatprep.subr.bf16.mxu0 0
    %730 = vmatpush1.bf16.msra.mxu0 0
    %731 = vmatprep.subr.bf16.mxu0 0
    %732 = vmatpush1.bf16.msra.mxu0 0
    %733 = vmatprep.subr.bf16.mxu0 0
    %734 = vmatpush1.bf16.msra.mxu0 0
    %735 = vmatprep.subr.bf16.mxu0 0
    %736 = vmatpush1.bf16.msra.mxu0 0
    %737 = vmatprep.subr.bf16.mxu0 0
    %738 = vmatpush1.bf16.msra.mxu0 0
    %739 = vmatprep.subr.bf16.mxu0 0
    %740 = vmatpush1.bf16.msra.mxu0 0
    %741 = vmatprep.subr.bf16.mxu0 0
    %742 = vmatpush1.bf16.msra.mxu0 0
    %743 = vmatprep.subr.bf16.mxu0 0
    %744 = vmatpush1.bf16.msra.mxu0 0
    %745 = vmatprep.mubr.bf16.mxu0 0
    %746 = vmatmul.mubr.bf16.gmra.mrb[0].mxu0 %v163
    %v747 = vpop.f32.mrb[0].mxu0
    %v748 = vadd.f32 %v257, %v747
    %v749 = vpop.f32.mrb[0].mxu0
    %v750 = vadd.f32 %v261, %v749
    %v751 = vpop.f32.mrb[0].mxu0
    %v752 = vpop.f32.mrb[0].mxu0
    %753 = vdwg.mxu0
    %v754 = vmax.f32 %v625, 0.0
    %v755 = vmax.f32 %v627, 0.0
    %v756 = vmax.f32 %v666, 0.0
    %v757 = vmax.f32 %v668, 0.0
    %v758 = vmax.f32 %v707, 0.0
    %v759 = vmax.f32 %v709, 0.0
    %v760 = vmax.f32 %v748, 0.0
    %v761 = vmax.f32 %v750, 0.0
    %v762 = vpack.c.bf16 %v754, %v754
    %v763 = vpack.c.bf16 %v755, %v755
    %v764 = vpack.c.bf16 %v756, %v756
    %v765 = vpack.c.bf16 %v757, %v757
    %v766 = vpack.c.bf16 %v758, %v758
    %v767 = vpack.c.bf16 %v759, %v759
    %v768 = vpack.c.bf16 %v760, %v760
    %v769 = vpack.c.bf16 %v761, %v761
    %v770 = vld [vmem:[#allocation8] sm:$0xf]
    %v771 = vld [vmem:[#allocation8 + $0x4] sm:$0xf]
    %v772 = vld [vmem:[#allocation8 + $0x8] sm:$0xf]
    %v773 = vld [vmem:[#allocation8 + $0xc] sm:$0xf]
    %v774 = vld [vmem:[#allocation8 + $0x10] sm:$0xf]
    %v775 = vld [vmem:[#allocation8 + $0x14] sm:$0xf]
    %v776 = vld [vmem:[#allocation8 + $0x18] sm:$0xf]
    %v777 = vld [vmem:[#allocation8 + $0x1c] sm:$0xf]
    %v778 = vld [vmem:[#allocation8 + $0x20] sm:$0xf]
    %v779 = vld [vmem:[#allocation8 + $0x24] sm:$0xf]
    %v780 = vld [vmem:[#allocation8 + $0x28] sm:$0xf]
    %v781 = vld [vmem:[#allocation8 + $0x2c] sm:$0xf]
    %v782 = vld [vmem:[#allocation8 + $0x30] sm:$0xf]
    %v783 = vld [vmem:[#allocation8 + $0x34] sm:$0xf]
    %v784 = vld [vmem:[#allocation8 + $0x38] sm:$0xf]
    %v785 = vld [vmem:[#allocation8 + $0x3c] sm:$0xf]
    %v786 = vld [vmem:[#allocation8 + $0x40] sm:$0xf]
    %v787 = vld [vmem:[#allocation8 + $0x44] sm:$0xf]
    %v788 = vld [vmem:[#allocation8 + $0x48] sm:$0xf]
    %v789 = vld [vmem:[#allocation8 + $0x4c] sm:$0xf]
    %v790 = vld [vmem:[#allocation8 + $0x50] sm:$0xf]
    %v791 = vld [vmem:[#allocation8 + $0x54] sm:$0xf]
    %v792 = vld [vmem:[#allocation8 + $0x58] sm:$0xf]
    %v793 = vld [vmem:[#allocation8 + $0x5c] sm:$0xf]
    %v794 = vld [vmem:[#allocation8 + $0x60] sm:$0xf]
    %v795 = vld [vmem:[#allocation8 + $0x64] sm:$0xf]
    %v796 = vld [vmem:[#allocation8 + $0x68] sm:$0xf]
    %v797 = vld [vmem:[#allocation8 + $0x6c] sm:$0xf]
    %v798 = vld [vmem:[#allocation8 + $0x70] sm:$0xf]
    %v799 = vld [vmem:[#allocation8 + $0x74] sm:$0xf]
    %v800 = vld [vmem:[#allocation8 + $0x78] sm:$0xf]
    %v801 = vld [vmem:[#allocation8 + $0x7c] sm:$0xf]
    %v802 = vld [vmem:[#allocation8 + $0x80] sm:$0xf]
    %v803 = vld [vmem:[#allocation8 + $0x84] sm:$0xf]
    %v804 = vld [vmem:[#allocation8 + $0x88] sm:$0xf]
    %v805 = vld [vmem:[#allocation8 + $0x8c] sm:$0xf]
    %v806 = vld [vmem:[#allocation8 + $0x90] sm:$0xf]
    %v807 = vld [vmem:[#allocation8 + $0x94] sm:$0xf]
    %v808 = vld [vmem:[#allocation8 + $0x98] sm:$0xf]
    %v809 = vld [vmem:[#allocation8 + $0x9c] sm:$0xf]
    %v810 = vld [vmem:[#allocation8 + $0xa0] sm:$0xf]
    %v811 = vld [vmem:[#allocation8 + $0xa4] sm:$0xf]
    %v812 = vld [vmem:[#allocation8 + $0xa8] sm:$0xf]
    %v813 = vld [vmem:[#allocation8 + $0xac] sm:$0xf]
    %v814 = vld [vmem:[#allocation8 + $0xb0] sm:$0xf]
    %v815 = vld [vmem:[#allocation8 + $0xb4] sm:$0xf]
    %v816 = vld [vmem:[#allocation8 + $0xb8] sm:$0xf]
    %v817 = vld [vmem:[#allocation8 + $0xbc] sm:$0xf]
    %v818 = vld [vmem:[#allocation8 + $0xc0] sm:$0xf]
    %v819 = vld [vmem:[#allocation8 + $0xc4] sm:$0xf]
    %v820 = vld [vmem:[#allocation8 + $0xc8] sm:$0xf]
    %v821 = vld [vmem:[#allocation8 + $0xcc] sm:$0xf]
    %v822 = vld [vmem:[#allocation8 + $0xd0] sm:$0xf]
    %v823 = vld [vmem:[#allocation8 + $0xd4] sm:$0xf]
    %v824 = vld [vmem:[#allocation8 + $0xd8] sm:$0xf]
    %v825 = vld [vmem:[#allocation8 + $0xdc] sm:$0xf]
    %v826 = vld [vmem:[#allocation8 + $0xe0] sm:$0xf]
    %v827 = vld [vmem:[#allocation8 + $0xe4] sm:$0xf]
    %v828 = vld [vmem:[#allocation8 + $0xe8] sm:$0xf]
    %v829 = vld [vmem:[#allocation8 + $0xec] sm:$0xf]
    %v830 = vld [vmem:[#allocation8 + $0xf0] sm:$0xf]
    %v831 = vld [vmem:[#allocation8 + $0xf4] sm:$0xf]
    %v832 = vld [vmem:[#allocation8 + $0xf8] sm:$0xf]
    %v833 = vld [vmem:[#allocation8 + $0xfc] sm:$0xf]
    %v834 = vld [vmem:[#allocation8 + $0x100] sm:$0xf]
    %v835 = vld [vmem:[#allocation8 + $0x104] sm:$0xf]
    %v836 = vld [vmem:[#allocation8 + $0x108] sm:$0xf]
    %v837 = vld [vmem:[#allocation8 + $0x10c] sm:$0xf]
    %v838 = vld [vmem:[#allocation8 + $0x110] sm:$0xf]
    %v839 = vld [vmem:[#allocation8 + $0x114] sm:$0xf]
    %v840 = vld [vmem:[#allocation8 + $0x118] sm:$0xf]
    %v841 = vld [vmem:[#allocation8 + $0x11c] sm:$0xf]
    %v842 = vld [vmem:[#allocation8 + $0x120] sm:$0xf]
    %v843 = vld [vmem:[#allocation8 + $0x124] sm:$0xf]
    %v844 = vld [vmem:[#allocation8 + $0x128] sm:$0xf]
    %v845 = vld [vmem:[#allocation8 + $0x12c] sm:$0xf]
    %v846 = vld [vmem:[#allocation8 + $0x130] sm:$0xf]
    %v847 = vld [vmem:[#allocation8 + $0x134] sm:$0xf]
    %v848 = vld [vmem:[#allocation8 + $0x138] sm:$0xf]
    %v849 = vld [vmem:[#allocation8 + $0x13c] sm:$0xf]
    %v850 = vld [vmem:[#allocation8 + $0x140] sm:$0xf]
    %v851 = vld [vmem:[#allocation8 + $0x144] sm:$0xf]
    %v852 = vld [vmem:[#allocation8 + $0x148] sm:$0xf]
    %v853 = vld [vmem:[#allocation8 + $0x14c] sm:$0xf]
    %v854 = vld [vmem:[#allocation8 + $0x150] sm:$0xf]
    %v855 = vld [vmem:[#allocation8 + $0x154] sm:$0xf]
    %v856 = vld [vmem:[#allocation8 + $0x158] sm:$0xf]
    %v857 = vld [vmem:[#allocation8 + $0x15c] sm:$0xf]
    %v858 = vld [vmem:[#allocation8 + $0x160] sm:$0xf]
    %v859 = vld [vmem:[#allocation8 + $0x164] sm:$0xf]
    %v860 = vld [vmem:[#allocation8 + $0x168] sm:$0xf]
    %v861 = vld [vmem:[#allocation8 + $0x16c] sm:$0xf]
    %v862 = vld [vmem:[#allocation8 + $0x170] sm:$0xf]
    %v863 = vld [vmem:[#allocation8 + $0x174] sm:$0xf]
    %v864 = vld [vmem:[#allocation8 + $0x178] sm:$0xf]
    %v865 = vld [vmem:[#allocation8 + $0x17c] sm:$0xf]
    %v866 = vld [vmem:[#allocation8 + $0x180] sm:$0xf]
    %v867 = vld [vmem:[#allocation8 + $0x184] sm:$0xf]
    %v868 = vld [vmem:[#allocation8 + $0x188] sm:$0xf]
    %v869 = vld [vmem:[#allocation8 + $0x18c] sm:$0xf]
    %v870 = vld [vmem:[#allocation8 + $0x190] sm:$0xf]
    %v871 = vld [vmem:[#allocation8 + $0x194] sm:$0xf]
    %v872 = vld [vmem:[#allocation8 + $0x198] sm:$0xf]
    %v873 = vld [vmem:[#allocation8 + $0x19c] sm:$0xf]
    %v874 = vld [vmem:[#allocation8 + $0x1a0] sm:$0xf]
    %v875 = vld [vmem:[#allocation8 + $0x1a4] sm:$0xf]
    %v876 = vld [vmem:[#allocation8 + $0x1a8] sm:$0xf]
    %v877 = vld [vmem:[#allocation8 + $0x1ac] sm:$0xf]
    %v878 = vld [vmem:[#allocation8 + $0x1b0] sm:$0xf]
    %v879 = vld [vmem:[#allocation8 + $0x1b4] sm:$0xf]
    %v880 = vld [vmem:[#allocation8 + $0x1b8] sm:$0xf]
    %v881 = vld [vmem:[#allocation8 + $0x1bc] sm:$0xf]
    %v882 = vld [vmem:[#allocation8 + $0x1c0] sm:$0xf]
    %v883 = vld [vmem:[#allocation8 + $0x1c4] sm:$0xf]
    %v884 = vld [vmem:[#allocation8 + $0x1c8] sm:$0xf]
    %v885 = vld [vmem:[#allocation8 + $0x1cc] sm:$0xf]
    %v886 = vld [vmem:[#allocation8 + $0x1d0] sm:$0xf]
    %v887 = vld [vmem:[#allocation8 + $0x1d4] sm:$0xf]
    %v888 = vld [vmem:[#allocation8 + $0x1d8] sm:$0xf]
    %v889 = vld [vmem:[#allocation8 + $0x1dc] sm:$0xf]
    %v890 = vld [vmem:[#allocation8 + $0x1e0] sm:$0xf]
    %v891 = vld [vmem:[#allocation8 + $0x1e4] sm:$0xf]
    %v892 = vld [vmem:[#allocation8 + $0x1e8] sm:$0xf]
    %v893 = vld [vmem:[#allocation8 + $0x1ec] sm:$0xf]
    %v894 = vld [vmem:[#allocation8 + $0x1f0] sm:$0xf]
    %v895 = vld [vmem:[#allocation8 + $0x1f4] sm:$0xf]
    %v896 = vld [vmem:[#allocation8 + $0x1f8] sm:$0xf]
    %v897 = vld [vmem:[#allocation8 + $0x1fc] sm:$0xf]
    %v898 = vld [vmem:[%s6] sm:$0x1]
    %v900 = vlaneseq
    %v901 = vshrl.u32 %v900, 7
    %v902 = vsub.s32 0, %v901
    %v903 = vrot.slane %v898, %v902
    %v1033 = vunpack.c.l.b16 %v770
    %v1034 = vunpack.c.l.b16 %v771
    %v1035 = vunpack.c.l.b16 %v772
    %v1036 = vunpack.c.l.b16 %v773
    %v1037 = vunpack.c.l.b16 %v774
    %v1038 = vunpack.c.l.b16 %v775
    %v1039 = vunpack.c.l.b16 %v776
    %v1040 = vunpack.c.l.b16 %v777
    %v1041 = vunpack.c.l.b16 %v778
    %v1042 = vunpack.c.l.b16 %v779
    %v1043 = vunpack.c.l.b16 %v780
    %v1044 = vunpack.c.l.b16 %v781
    %v1045 = vunpack.c.l.b16 %v782
    %v1046 = vunpack.c.l.b16 %v783
    %v1047 = vunpack.c.l.b16 %v784
    %v1048 = vunpack.c.l.b16 %v785
    %v1049 = vunpack.c.l.b16 %v786
    %v1050 = vunpack.c.l.b16 %v787
    %v1051 = vunpack.c.l.b16 %v788
    %v1052 = vunpack.c.l.b16 %v789
    %v1053 = vunpack.c.l.b16 %v790
    %v1054 = vunpack.c.l.b16 %v791
    %v1055 = vunpack.c.l.b16 %v792
    %v1056 = vunpack.c.l.b16 %v793
    %v1057 = vunpack.c.l.b16 %v794
    %v1058 = vunpack.c.l.b16 %v795
    %v1059 = vunpack.c.l.b16 %v796
    %v1060 = vunpack.c.l.b16 %v797
    %v1061 = vunpack.c.l.b16 %v798
    %v1062 = vunpack.c.l.b16 %v799
    %v1063 = vunpack.c.l.b16 %v800
    %v1064 = vunpack.c.l.b16 %v801
    %v1065 = vunpack.c.l.b16 %v802
    %v1066 = vunpack.c.l.b16 %v803
    %v1067 = vunpack.c.l.b16 %v804
    %v1068 = vunpack.c.l.b16 %v805
    %v1069 = vunpack.c.l.b16 %v806
    %v1070 = vunpack.c.l.b16 %v807
    %v1071 = vunpack.c.l.b16 %v808
    %v1072 = vunpack.c.l.b16 %v809
    %v1073 = vunpack.c.l.b16 %v810
    %v1074 = vunpack.c.l.b16 %v811
    %v1075 = vunpack.c.l.b16 %v812
    %v1076 = vunpack.c.l.b16 %v813
    %v1077 = vunpack.c.l.b16 %v814
    %v1078 = vunpack.c.l.b16 %v815
    %v1079 = vunpack.c.l.b16 %v816
    %v1080 = vunpack.c.l.b16 %v817
    %v1081 = vunpack.c.l.b16 %v818
    %v1082 = vunpack.c.l.b16 %v819
    %v1083 = vunpack.c.l.b16 %v820
    %v1084 = vunpack.c.l.b16 %v821
    %v1085 = vunpack.c.l.b16 %v822
    %v1086 = vunpack.c.l.b16 %v823
    %v1087 = vunpack.c.l.b16 %v824
    %v1088 = vunpack.c.l.b16 %v825
    %v1089 = vunpack.c.l.b16 %v826
    %v1090 = vunpack.c.l.b16 %v827
    %v1091 = vunpack.c.l.b16 %v828
    %v1092 = vunpack.c.l.b16 %v829
    %v1093 = vunpack.c.l.b16 %v830
    %v1094 = vunpack.c.l.b16 %v831
    %v1095 = vunpack.c.l.b16 %v832
    %v1096 = vunpack.c.l.b16 %v833
    %v1097 = vunpack.c.l.b16 %v834
    %v1098 = vunpack.c.l.b16 %v835
    %v1099 = vunpack.c.l.b16 %v836
    %v1100 = vunpack.c.l.b16 %v837
    %v1101 = vunpack.c.l.b16 %v838
    %v1102 = vunpack.c.l.b16 %v839
    %v1103 = vunpack.c.l.b16 %v840
    %v1104 = vunpack.c.l.b16 %v841
    %v1105 = vunpack.c.l.b16 %v842
    %v1106 = vunpack.c.l.b16 %v843
    %v1107 = vunpack.c.l.b16 %v844
    %v1108 = vunpack.c.l.b16 %v845
    %v1109 = vunpack.c.l.b16 %v846
    %v1110 = vunpack.c.l.b16 %v847
    %v1111 = vunpack.c.l.b16 %v848
    %v1112 = vunpack.c.l.b16 %v849
    %v1113 = vunpack.c.l.b16 %v850
    %v1114 = vunpack.c.l.b16 %v851
    %v1115 = vunpack.c.l.b16 %v852
    %v1116 = vunpack.c.l.b16 %v853
    %v1117 = vunpack.c.l.b16 %v854
    %v1118 = vunpack.c.l.b16 %v855
    %v1119 = vunpack.c.l.b16 %v856
    %v1120 = vunpack.c.l.b16 %v857
    %v1121 = vunpack.c.l.b16 %v858
    %v1122 = vunpack.c.l.b16 %v859
    %v1123 = vunpack.c.l.b16 %v860
    %v1124 = vunpack.c.l.b16 %v861
    %v1125 = vunpack.c.l.b16 %v862
    %v1126 = vunpack.c.l.b16 %v863
    %v1127 = vunpack.c.l.b16 %v864
    %v1128 = vunpack.c.l.b16 %v865
    %v1129 = vunpack.c.l.b16 %v866
    %v1130 = vunpack.c.l.b16 %v867
    %v1131 = vunpack.c.l.b16 %v868
    %v1132 = vunpack.c.l.b16 %v869
    %v1133 = vunpack.c.l.b16 %v870
    %v1134 = vunpack.c.l.b16 %v871
    %v1135 = vunpack.c.l.b16 %v872
    %v1136 = vunpack.c.l.b16 %v873
    %v1137 = vunpack.c.l.b16 %v874
    %v1138 = vunpack.c.l.b16 %v875
    %v1139 = vunpack.c.l.b16 %v876
    %v1140 = vunpack.c.l.b16 %v877
    %v1141 = vunpack.c.l.b16 %v878
    %v1142 = vunpack.c.l.b16 %v879
    %v1143 = vunpack.c.l.b16 %v880
    %v1144 = vunpack.c.l.b16 %v881
    %v1145 = vunpack.c.l.b16 %v882
    %v1146 = vunpack.c.l.b16 %v883
    %v1147 = vunpack.c.l.b16 %v884
    %v1148 = vunpack.c.l.b16 %v885
    %v1149 = vunpack.c.l.b16 %v886
    %v1150 = vunpack.c.l.b16 %v887
    %v1151 = vunpack.c.l.b16 %v888
    %v1152 = vunpack.c.l.b16 %v889
    %v1153 = vunpack.c.l.b16 %v890
    %v1154 = vunpack.c.l.b16 %v891
    %v1155 = vunpack.c.l.b16 %v892
    %v1156 = vunpack.c.l.b16 %v893
    %v1157 = vunpack.c.l.b16 %v894
    %v1158 = vunpack.c.l.b16 %v895
    %v1159 = vunpack.c.l.b16 %v896
    %v1160 = vunpack.c.l.b16 %v897
    %v1161 = vpack.c.b16 %v1034, %v1033
    %v1162 = vpack.c.b16 %v1036, %v1035
    %v1163 = vpack.c.b16 %v1038, %v1037
    %v1164 = vpack.c.b16 %v1040, %v1039
    %v1165 = vpack.c.b16 %v1042, %v1041
    %v1166 = vpack.c.b16 %v1044, %v1043
    %v1167 = vpack.c.b16 %v1046, %v1045
    %v1168 = vpack.c.b16 %v1048, %v1047
    %v1169 = vpack.c.b16 %v1050, %v1049
    %v1170 = vpack.c.b16 %v1052, %v1051
    %v1171 = vpack.c.b16 %v1054, %v1053
    %v1172 = vpack.c.b16 %v1056, %v1055
    %v1173 = vpack.c.b16 %v1058, %v1057
    %v1174 = vpack.c.b16 %v1060, %v1059
    %v1175 = vpack.c.b16 %v1062, %v1061
    %v1176 = vpack.c.b16 %v1064, %v1063
    %v1177 = vpack.c.b16 %v1066, %v1065
    %v1178 = vpack.c.b16 %v1068, %v1067
    %v1179 = vpack.c.b16 %v1070, %v1069
    %v1180 = vpack.c.b16 %v1072, %v1071
    %v1181 = vpack.c.b16 %v1074, %v1073
    %v1182 = vpack.c.b16 %v1076, %v1075
    %v1183 = vpack.c.b16 %v1078, %v1077
    %v1184 = vpack.c.b16 %v1080, %v1079
    %v1185 = vpack.c.b16 %v1082, %v1081
    %v1186 = vpack.c.b16 %v1084, %v1083
    %v1187 = vpack.c.b16 %v1086, %v1085
    %v1188 = vpack.c.b16 %v1088, %v1087
    %v1189 = vpack.c.b16 %v1090, %v1089
    %v1190 = vpack.c.b16 %v1092, %v1091
    %v1191 = vpack.c.b16 %v1094, %v1093
    %v1192 = vpack.c.b16 %v1096, %v1095
    %v1193 = vpack.c.b16 %v1098, %v1097
    %v1194 = vpack.c.b16 %v1100, %v1099
    %v1195 = vpack.c.b16 %v1102, %v1101
    %v1196 = vpack.c.b16 %v1104, %v1103
    %v1197 = vpack.c.b16 %v1106, %v1105
    %v1198 = vpack.c.b16 %v1108, %v1107
    %v1199 = vpack.c.b16 %v1110, %v1109
    %v1200 = vpack.c.b16 %v1112, %v1111
    %v1201 = vpack.c.b16 %v1114, %v1113
    %v1202 = vpack.c.b16 %v1116, %v1115
    %v1203 = vpack.c.b16 %v1118, %v1117
    %v1204 = vpack.c.b16 %v1120, %v1119
    %v1205 = vpack.c.b16 %v1122, %v1121
    %v1206 = vpack.c.b16 %v1124, %v1123
    %v1207 = vpack.c.b16 %v1126, %v1125
    %v1208 = vpack.c.b16 %v1128, %v1127
    %v1209 = vpack.c.b16 %v1130, %v1129
    %v1210 = vpack.c.b16 %v1132, %v1131
    %v1211 = vpack.c.b16 %v1134, %v1133
    %v1212 = vpack.c.b16 %v1136, %v1135
    %v1213 = vpack.c.b16 %v1138, %v1137
    %v1214 = vpack.c.b16 %v1140, %v1139
    %v1215 = vpack.c.b16 %v1142, %v1141
    %v1216 = vpack.c.b16 %v1144, %v1143
    %v1217 = vpack.c.b16 %v1146, %v1145
    %v1218 = vpack.c.b16 %v1148, %v1147
    %v1219 = vpack.c.b16 %v1150, %v1149
    %v1220 = vpack.c.b16 %v1152, %v1151
    %v1221 = vpack.c.b16 %v1154, %v1153
    %v1222 = vpack.c.b16 %v1156, %v1155
    %v1223 = vpack.c.b16 %v1158, %v1157
    %v1224 = vpack.c.b16 %v1160, %v1159
    %1289 = vmatprep.subr.bf16.mxu0 0
    %1290 = vmatpush1.bf16.msra.mxu0 %v1161
    %1291 = vmatprep.subr.bf16.mxu0 0
    %1292 = vmatpush1.bf16.msra.mxu0 %v1162
    %1293 = vmatprep.subr.bf16.mxu0 0
    %1294 = vmatpush1.bf16.msra.mxu0 %v1163
    %1295 = vmatprep.subr.bf16.mxu0 0
    %1296 = vmatpush1.bf16.msra.mxu0 %v1164
    %1297 = vmatprep.subr.bf16.mxu0 0
    %1298 = vmatpush1.bf16.msra.mxu0 %v1165
    %1299 = vmatprep.subr.bf16.mxu0 0
    %1300 = vmatpush1.bf16.msra.mxu0 %v1166
    %1301 = vmatprep.subr.bf16.mxu0 0
    %1302 = vmatpush1.bf16.msra.mxu0 %v1167
    %1303 = vmatprep.subr.bf16.mxu0 0
    %1304 = vmatpush1.bf16.msra.mxu0 %v1168
    %1305 = vmatprep.subr.bf16.mxu0 0
    %1306 = vmatpush1.bf16.msra.mxu0 %v1169
    %1307 = vmatprep.subr.bf16.mxu0 0
    %1308 = vmatpush1.bf16.msra.mxu0 %v1170
    %1309 = vmatprep.subr.bf16.mxu0 0
    %1310 = vmatpush1.bf16.msra.mxu0 %v1171
    %1311 = vmatprep.subr.bf16.mxu0 0
    %1312 = vmatpush1.bf16.msra.mxu0 %v1172
    %1313 = vmatprep.subr.bf16.mxu0 0
    %1314 = vmatpush1.bf16.msra.mxu0 %v1173
    %1315 = vmatprep.subr.bf16.mxu0 0
    %1316 = vmatpush1.bf16.msra.mxu0 %v1174
    %1317 = vmatprep.subr.bf16.mxu0 0
    %1318 = vmatpush1.bf16.msra.mxu0 %v1175
    %1319 = vmatprep.subr.bf16.mxu0 0
    %1320 = vmatpush1.bf16.msra.mxu0 %v1176
    %1321 = vmatprep.mubr.bf16.mxu0 %v763
    %1322 = vmatmul.mubr.bf16.gmra.mrb[0].mxu0 %v762
    %v1323 = vpop.f32.mrb[0].mxu0
    %v1324 = vadd.f32 %v903, %v1323
    %v1325 = vpop.f32.mrb[0].mxu0
    %v1326 = vpop.f32.mrb[0].mxu0
    %v1327 = vpop.f32.mrb[0].mxu0
    %1328 = vdwg.mxu0
    %1329 = vmatprep.subr.bf16.mxu0 0
    %1330 = vmatpush1.bf16.msra.mxu0 %v1177
    %1331 = vmatprep.subr.bf16.mxu0 0
    %1332 = vmatpush1.bf16.msra.mxu0 %v1178
    %1333 = vmatprep.subr.bf16.mxu0 0
    %1334 = vmatpush1.bf16.msra.mxu0 %v1179
    %1335 = vmatprep.subr.bf16.mxu0 0
    %1336 = vmatpush1.bf16.msra.mxu0 %v1180
    %1337 = vmatprep.subr.bf16.mxu0 0
    %1338 = vmatpush1.bf16.msra.mxu0 %v1181
    %1339 = vmatprep.subr.bf16.mxu0 0
    %1340 = vmatpush1.bf16.msra.mxu0 %v1182
    %1341 = vmatprep.subr.bf16.mxu0 0
    %1342 = vmatpush1.bf16.msra.mxu0 %v1183
    %1343 = vmatprep.subr.bf16.mxu0 0
    %1344 = vmatpush1.bf16.msra.mxu0 %v1184
    %1345 = vmatprep.subr.bf16.mxu0 0
    %1346 = vmatpush1.bf16.msra.mxu0 %v1185
    %1347 = vmatprep.subr.bf16.mxu0 0
    %1348 = vmatpush1.bf16.msra.mxu0 %v1186
    %1349 = vmatprep.subr.bf16.mxu0 0
    %1350 = vmatpush1.bf16.msra.mxu0 %v1187
    %1351 = vmatprep.subr.bf16.mxu0 0
    %1352 = vmatpush1.bf16.msra.mxu0 %v1188
    %1353 = vmatprep.subr.bf16.mxu0 0
    %1354 = vmatpush1.bf16.msra.mxu0 %v1189
    %1355 = vmatprep.subr.bf16.mxu0 0
    %1356 = vmatpush1.bf16.msra.mxu0 %v1190
    %1357 = vmatprep.subr.bf16.mxu0 0
    %1358 = vmatpush1.bf16.msra.mxu0 %v1191
    %1359 = vmatprep.subr.bf16.mxu0 0
    %1360 = vmatpush1.bf16.msra.mxu0 %v1192
    %1361 = vmatprep.mubr.bf16.mxu0 %v765
    %1362 = vmatmul.mubr.bf16.gmra.mrb[0].mxu0 %v764
    %v1363 = vpop.f32.mrb[0].mxu0
    %v1364 = vadd.f32 %v1324, %v1363
    %v1365 = vpop.f32.mrb[0].mxu0
    %v1366 = vpop.f32.mrb[0].mxu0
    %v1367 = vpop.f32.mrb[0].mxu0
    %1368 = vdwg.mxu0
    %1369 = vmatprep.subr.bf16.mxu0 0
    %1370 = vmatpush1.bf16.msra.mxu0 %v1193
    %1371 = vmatprep.subr.bf16.mxu0 0
    %1372 = vmatpush1.bf16.msra.mxu0 %v1194
    %1373 = vmatprep.subr.bf16.mxu0 0
    %1374 = vmatpush1.bf16.msra.mxu0 %v1195
    %1375 = vmatprep.subr.bf16.mxu0 0
    %1376 = vmatpush1.bf16.msra.mxu0 %v1196
    %1377 = vmatprep.subr.bf16.mxu0 0
    %1378 = vmatpush1.bf16.msra.mxu0 %v1197
    %1379 = vmatprep.subr.bf16.mxu0 0
    %1380 = vmatpush1.bf16.msra.mxu0 %v1198
    %1381 = vmatprep.subr.bf16.mxu0 0
    %1382 = vmatpush1.bf16.msra.mxu0 %v1199
    %1383 = vmatprep.subr.bf16.mxu0 0
    %1384 = vmatpush1.bf16.msra.mxu0 %v1200
    %1385 = vmatprep.subr.bf16.mxu0 0
    %1386 = vmatpush1.bf16.msra.mxu0 %v1201
    %1387 = vmatprep.subr.bf16.mxu0 0
    %1388 = vmatpush1.bf16.msra.mxu0 %v1202
    %1389 = vmatprep.subr.bf16.mxu0 0
    %1390 = vmatpush1.bf16.msra.mxu0 %v1203
    %1391 = vmatprep.subr.bf16.mxu0 0
    %1392 = vmatpush1.bf16.msra.mxu0 %v1204
    %1393 = vmatprep.subr.bf16.mxu0 0
    %1394 = vmatpush1.bf16.msra.mxu0 %v1205
    %1395 = vmatprep.subr.bf16.mxu0 0
    %1396 = vmatpush1.bf16.msra.mxu0 %v1206
    %1397 = vmatprep.subr.bf16.mxu0 0
    %1398 = vmatpush1.bf16.msra.mxu0 %v1207
    %1399 = vmatprep.subr.bf16.mxu0 0
    %1400 = vmatpush1.bf16.msra.mxu0 %v1208
    %1401 = vmatprep.mubr.bf16.mxu0 %v767
    %1402 = vmatmul.mubr.bf16.gmra.mrb[0].mxu0 %v766
    %v1403 = vpop.f32.mrb[0].mxu0
    %v1404 = vadd.f32 %v1364, %v1403
    %v1405 = vpop.f32.mrb[0].mxu0
    %v1406 = vpop.f32.mrb[0].mxu0
    %v1407 = vpop.f32.mrb[0].mxu0
    %1408 = vdwg.mxu0
    %1409 = vmatprep.subr.bf16.mxu0 0
    %1410 = vmatpush1.bf16.msra.mxu0 %v1209
    %1411 = vmatprep.subr.bf16.mxu0 0
    %1412 = vmatpush1.bf16.msra.mxu0 %v1210
    %1413 = vmatprep.subr.bf16.mxu0 0
    %1414 = vmatpush1.bf16.msra.mxu0 %v1211
    %1415 = vmatprep.subr.bf16.mxu0 0
    %1416 = vmatpush1.bf16.msra.mxu0 %v1212
    %1417 = vmatprep.subr.bf16.mxu0 0
    %1418 = vmatpush1.bf16.msra.mxu0 %v1213
    %1419 = vmatprep.subr.bf16.mxu0 0
    %1420 = vmatpush1.bf16.msra.mxu0 %v1214
    %1421 = vmatprep.subr.bf16.mxu0 0
    %1422 = vmatpush1.bf16.msra.mxu0 %v1215
    %1423 = vmatprep.subr.bf16.mxu0 0
    %1424 = vmatpush1.bf16.msra.mxu0 %v1216
    %1425 = vmatprep.subr.bf16.mxu0 0
    %1426 = vmatpush1.bf16.msra.mxu0 %v1217
    %1427 = vmatprep.subr.bf16.mxu0 0
    %1428 = vmatpush1.bf16.msra.mxu0 %v1218
    %1429 = vmatprep.subr.bf16.mxu0 0
    %1430 = vmatpush1.bf16.msra.mxu0 %v1219
    %1431 = vmatprep.subr.bf16.mxu0 0
    %1432 = vmatpush1.bf16.msra.mxu0 %v1220
    %1433 = vmatprep.subr.bf16.mxu0 0
    %1434 = vmatpush1.bf16.msra.mxu0 %v1221
    %1435 = vmatprep.subr.bf16.mxu0 0
    %1436 = vmatpush1.bf16.msra.mxu0 %v1222
    %1437 = vmatprep.subr.bf16.mxu0 0
    %1438 = vmatpush1.bf16.msra.mxu0 %v1223
    %1439 = vmatprep.subr.bf16.mxu0 0
    %1440 = vmatpush1.bf16.msra.mxu0 %v1224
    %1441 = vmatprep.mubr.bf16.mxu0 %v769
    %1442 = vmatmul.mubr.bf16.gmra.mrb[0].mxu0 %v768
    %v1443 = vpop.f32.mrb[0].mxu0
    %v1444 = vadd.f32 %v1404, %v1443
    %v1445 = vpop.f32.mrb[0].mxu0
    %v1446 = vpop.f32.mrb[0].mxu0
    %v1447 = vpop.f32.mrb[0].mxu0
    %1448 = vdwg.mxu0
    %1449 = vst [vmem:[#allocation10] sm:$0xff] %v1444
    // Predicated region
    $region46: #{tpu_custom_call.1} parent=1 // pred_check
      _
    $region47: #{tpu_custom_call.1} parent=1 // pred_check_branch
      %1451 = sbr.rel (0) target = $region49
    $region48: #{tpu_custom_call.1} parent=1 // pred_region
      %s1453 = ssub.s32 128, 128
      %1454 = vsyncadd [#allocation4], %s1453
      %s1456 = sshll.u32 [#allocation10], 4
      %s1457 = int_to_ptr.vmem [resolvable:$true] %s1456
      %1459 = dma.vmem_to_hbm [thread:$0]  %s1457, 128, %s7, [#allocation4]
    $region49: #{tpu_custom_call.1} parent=1 // pred_fallthru
      _
    // Predicated region
    $region50: #{tpu_custom_call.1} parent=1 // pred_check
      _
    $region51: #{tpu_custom_call.1} parent=1 // pred_check_branch
      %1461 = sbr.rel (0) target = $region53
    $region52: #{tpu_custom_call.1} parent=1 // pred_region
      %1462 = dma.done [#allocation4], 128
    $region53: #{tpu_custom_call.1} parent=1 // pred_fallthru
      _
    %1463 = vsyncpa [#allocation3], 1
    %1464 = vsyncpa [#allocation6], 1
    %1465 = vsyncpa [#allocation9], 1
    %1466 = vsyncpa [#allocation4], 1

// kernel: tpu_custom_call.1
$region0: #{tpu_custom_call.1}
  #allocation0 [shape = 'u32[]', space=smem, size = 0x4, offset = 0x4, fixed_abs, tag = 'smem constant byte address 0x4 - core index']
  #allocation1 [shape = 'u32[144,128]{1,0:T(1,128)}', space=vmem, size = 0x12000, scoped, tag = 'internal scratch']
  %s0 = inlined_call_operand.hbm [shape: f32[8,8], index: 0, kind: input, shape index: {}]
  %s1 = inlined_call_operand.hbm [shape: f32[8,128], index: 1, kind: input, shape index: {}]
  %s2 = inlined_call_operand.vmem [shape: f32[1,128], index: 2, kind: input, shape index: {}]
  %s3 = inlined_call_operand.hbm [shape: bf16[128,1024], index: 3, kind: input, shape index: {}]
  %s4 = inlined_call_operand.vmem [shape: f32[1,1024], index: 4, kind: input, shape index: {}]
  %s5 = inlined_call_operand.hbm [shape: bf16[1024,128], index: 5, kind: input, shape index: {}]
  %s6 = inlined_call_operand.vmem [shape: f32[1,128], index: 6, kind: input, shape index: {}]
  %s7 = inlined_call_operand.hbm [shape: f32[8,128], index: 7, kind: output, shape index: {}]
  %s8 = sld [smem:[#allocation0]]
  $region54: #{tpu_custom_call.1} parent=0
    _
  %s10 = ssub.s32 1, %s8
  %s11 = scalar_select 0, %s10, %s8
  $region1: #{tpu_custom_call.1} parent=0
    #allocation2 [shape = 'u8[4096]{0}', space=vmem, size = 0x1000, scoped, tag = 'input window, operand 0, single buffered']
    #allocation3 [shape = 's32[1]{0}', space=sflag, size = 0x4, scoped, tag = 'scoped memory for tpu_custom_call.1']
    #allocation4 [shape = 's32[1]{0}', space=sflag, size = 0x4, scoped, tag = 'scoped memory for tpu_custom_call.1']
    #allocation5 [shape = 'u8[4096]{0}', space=vmem, size = 0x1000, scoped, tag = 'input window, operand 1, single buffered']
    #allocation6 [shape = 's32[1]{0}', space=sflag, size = 0x4, scoped, tag = 'scoped memory for tpu_custom_call.1']
    #allocation7 [shape = 'u8[262144]{0}', space=vmem, size = 0x40000, scoped, tag = 'input window, operand 3, single buffered']
    #allocation8 [shape = 'u8[262144]{0}', space=vmem, size = 0x40000, scoped, tag = 'input window, operand 5, single buffered']
    #allocation9 [shape = 's32[1]{0}', space=sflag, size = 0x4, scoped, tag = 'scoped memory for tpu_custom_call.1']
    #allocation10 [shape = 'u8[4096]{0}', space=vmem, size = 0x1000, scoped, tag = 'output window, operand 0, single buffered']
    %12 = vsyncpa [#allocation3], 0
    %13 = vsyncpa [#allocation6], 0
    %14 = vsyncpa [#allocation9], 0
    %15 = vsyncpa [#allocation4], 0
    // Predicated region
    $region2: #{tpu_custom_call.1} parent=1 // pred_check
      _
    $region3: #{tpu_custom_call.1} parent=1 // pred_check_branch
      %17 = sbr.rel (0) target = $region5
    $region4: #{tpu_custom_call.1} parent=1 // pred_region
      %s19 = ssub.s32 128, 128
      %20 = vsyncadd [#allocation3], %s19
      %s22 = sshll.u32 [#allocation2], 4
      %s23 = int_to_ptr.vmem [resolvable:$true] %s22
      %25 = dma.hbm_to_vmem [thread:$0]  %s0, 128, %s23, [#allocation3]
    $region5: #{tpu_custom_call.1} parent=1 // pred_fallthru
      _
    // Predicated region
    $region6: #{tpu_custom_call.1} parent=1 // pred_check
      _
    $region7: #{tpu_custom_call.1} parent=1 // pred_check_branch
      %27 = sbr.rel (0) target = $region9
    $region8: #{tpu_custom_call.1} parent=1 // pred_region
      %s29 = ssub.s32 128, 128
      %30 = vsyncadd [#allocation6], %s29
      %s32 = sshll.u32 [#allocation5], 4
      %s33 = int_to_ptr.vmem [resolvable:$true] %s32
      %35 = dma.hbm_to_vmem [thread:$0]  %s1, 128, %s33, [#allocation6]
    $region9: #{tpu_custom_call.1} parent=1 // pred_fallthru
      _
    // Predicated region
    $region10: #{tpu_custom_call.1} parent=1 // pred_check
      _
    $region11: #{tpu_custom_call.1} parent=1 // pred_check_branch
      %37 = sbr.rel (0) target = $region13
    $region12: #{tpu_custom_call.1} parent=1 // pred_region
      _
    $region13: #{tpu_custom_call.1} parent=1 // pred_fallthru
      _
    // Predicated region
    $region14: #{tpu_custom_call.1} parent=1 // pred_check
      _
    $region15: #{tpu_custom_call.1} parent=1 // pred_check_branch
      %39 = sbr.rel (0) target = $region17
    $region16: #{tpu_custom_call.1} parent=1 // pred_region
      %s41 = ssub.s32 8192, 8192
      %42 = vsyncadd [#allocation6], %s41
      %s43 = sshll.u32 [#allocation7], 4
      %s44 = int_to_ptr.vmem [resolvable:$true] %s43
      %49 = dma.hbm_to_vmem [thread:$0]  %s3, 8192, %s44, [#allocation6], 512, 512, 32
    $region17: #{tpu_custom_call.1} parent=1 // pred_fallthru
      _
    // Predicated region
    $region18: #{tpu_custom_call.1} parent=1 // pred_check
      _
    $region19: #{tpu_custom_call.1} parent=1 // pred_check_branch
      %51 = sbr.rel (0) target = $region21
    $region20: #{tpu_custom_call.1} parent=1 // pred_region
      _
    $region21: #{tpu_custom_call.1} parent=1 // pred_fallthru
      _
    // Predicated region
    $region22: #{tpu_custom_call.1} parent=1 // pred_check
      _
    $region23: #{tpu_custom_call.1} parent=1 // pred_check_branch
      %53 = sbr.rel (0) target = $region25
    $region24: #{tpu_custom_call.1} parent=1 // pred_region
      %s55 = ssub.s32 8192, 8192
      %56 = vsyncadd [#allocation9], %s55
      %s57 = sshll.u32 [#allocation8], 4
      %s58 = int_to_ptr.vmem [resolvable:$true] %s57
      %63 = dma.hbm_to_vmem [thread:$0]  %s5, 8192, %s58, [#allocation9], 64, 64, 4
    $region25: #{tpu_custom_call.1} parent=1 // pred_fallthru
      _
    // Predicated region
    $region26: #{tpu_custom_call.1} parent=1 // pred_check
      _
    $region27: #{tpu_custom_call.1} parent=1 // pred_check_branch
      %65 = sbr.rel (0) target = $region29
    $region28: #{tpu_custom_call.1} parent=1 // pred_region
      _
    $region29: #{tpu_custom_call.1} parent=1 // pred_fallthru
      _
    // Predicated region
    $region30: #{tpu_custom_call.1} parent=1 // pred_check
      _
    $region31: #{tpu_custom_call.1} parent=1 // pred_check_branch
      %67 = sbr.rel (0) target = $region33
    $region32: #{tpu_custom_call.1} parent=1 // pred_region
      %68 = dma.done [#allocation3], 128
    $region33: #{tpu_custom_call.1} parent=1 // pred_fallthru
      _
    // Predicated region
    $region34: #{tpu_custom_call.1} parent=1 // pred_check
      _
    $region35: #{tpu_custom_call.1} parent=1 // pred_check_branch
      %70 = sbr.rel (0) target = $region37
    $region36: #{tpu_custom_call.1} parent=1 // pred_region
      %71 = dma.done [#allocation6], 128
    $region37: #{tpu_custom_call.1} parent=1 // pred_fallthru
      _
    // Predicated region
    $region38: #{tpu_custom_call.1} parent=1 // pred_check
      _
    $region39: #{tpu_custom_call.1} parent=1 // pred_check_branch
      %73 = sbr.rel (0) target = $region41
    $region40: #{tpu_custom_call.1} parent=1 // pred_region
      %74 = dma.done [#allocation6], 8192
    $region41: #{tpu_custom_call.1} parent=1 // pred_fallthru
      _
    // Predicated region
    $region42: #{tpu_custom_call.1} parent=1 // pred_check
      _
    $region43: #{tpu_custom_call.1} parent=1 // pred_check_branch
      %76 = sbr.rel (0) target = $region45
    $region44: #{tpu_custom_call.1} parent=1 // pred_region
      %77 = dma.done [#allocation9], 8192
    $region45: #{tpu_custom_call.1} parent=1 // pred_fallthru
      _
    %v79 = vld [vmem:[#allocation2] sm:$0xff]
    %v80 = vld [vmem:[#allocation5] sm:$0xff]
    %v81 = vld [vmem:[%s2] sm:$0x1]
    %v83 = vlaneseq
    %v84 = vshrl.u32 %v83, 7
    %v85 = vsub.s32 0, %v84
    %v86 = vrot.slane %v81, %v85
    %vm88 = vcmask 64512
    %v90 = vsel %vm88, %v79, 0
    %92 = vmatprep.subr.mxu0 0.0
    %93 = vmatpush1.msra.mxu0 %v80
    %94 = vmatprep.subr.mxu0 0.0
    %95 = vmatpush1.msra.mxu0 0.0
    %96 = vmatprep.subr.mxu0 0.0
    %97 = vmatpush1.msra.mxu0 0.0
    %98 = vmatprep.subr.mxu0 0.0
    %99 = vmatpush1.msra.mxu0 0.0
    %100 = vmatprep.subr.mxu0 0.0
    %101 = vmatpush1.msra.mxu0 0.0
    %102 = vmatprep.subr.mxu0 0.0
    %103 = vmatpush1.msra.mxu0 0.0
    %104 = vmatprep.subr.mxu0 0.0
    %105 = vmatpush1.msra.mxu0 0.0
    %106 = vmatprep.subr.mxu0 0.0
    %107 = vmatpush1.msra.mxu0 0.0
    %108 = vmatprep.subr.mxu0 0.0
    %109 = vmatpush1.msra.mxu0 0.0
    %110 = vmatprep.subr.mxu0 0.0
    %111 = vmatpush1.msra.mxu0 0.0
    %112 = vmatprep.subr.mxu0 0.0
    %113 = vmatpush1.msra.mxu0 0.0
    %114 = vmatprep.subr.mxu0 0.0
    %115 = vmatpush1.msra.mxu0 0.0
    %116 = vmatprep.subr.mxu0 0.0
    %117 = vmatpush1.msra.mxu0 0.0
    %118 = vmatprep.subr.mxu0 0.0
    %119 = vmatpush1.msra.mxu0 0.0
    %120 = vmatprep.subr.mxu0 0.0
    %121 = vmatpush1.msra.mxu0 0.0
    %122 = vmatprep.subr.mxu0 0.0
    %123 = vmatpush1.msra.mxu0 0.0
    %124 = vmatprep.subr.mxu0 0.0
    %125 = vmatpush1.msra.mxu0 0.0
    %126 = vmatprep.subr.mxu0 0.0
    %127 = vmatpush1.msra.mxu0 0.0
    %128 = vmatprep.subr.mxu0 0.0
    %129 = vmatpush1.msra.mxu0 0.0
    %130 = vmatprep.subr.mxu0 0.0
    %131 = vmatpush1.msra.mxu0 0.0
    %132 = vmatprep.subr.mxu0 0.0
    %133 = vmatpush1.msra.mxu0 0.0
    %134 = vmatprep.subr.mxu0 0.0
    %135 = vmatpush1.msra.mxu0 0.0
    %136 = vmatprep.subr.mxu0 0.0
    %137 = vmatpush1.msra.mxu0 0.0
    %138 = vmatprep.subr.mxu0 0.0
    %139 = vmatpush1.msra.mxu0 0.0
    %140 = vmatprep.subr.mxu0 0.0
    %141 = vmatpush1.msra.mxu0 0.0
    %142 = vmatprep.subr.mxu0 0.0
    %143 = vmatpush1.msra.mxu0 0.0
    %144 = vmatprep.subr.mxu0 0.0
    %145 = vmatpush1.msra.mxu0 0.0
    %146 = vmatprep.subr.mxu0 0.0
    %147 = vmatpush1.msra.mxu0 0.0
    %148 = vmatprep.subr.mxu0 0.0
    %149 = vmatpush1.msra.mxu0 0.0
    %150 = vmatprep.subr.mxu0 0.0
    %151 = vmatpush1.msra.mxu0 0.0
    %152 = vmatprep.subr.mxu0 0.0
    %153 = vmatpush1.msra.mxu0 0.0
    %154 = vmatprep.subr.mxu0 0.0
    %155 = vmatpush1.msra.mxu0 0.0
    %156 = vmatprep.mubr.f32.mxu0 0.0
    %157 = vmatmul.mubr.f32.gmra.mrb[0].mxu0 %v90
    %v158 = vpop.f32.mrb[0].mxu0
    %v159 = vadd.f32 %v86, %v158
    %v160 = vpop.f32.mrb[0].mxu0
    %161 = vdwg.mxu0
    %v162 = vmax.f32 %v159, 0.0
    %v163 = vpack.c.bf16 %v162, %v162
    %v164 = vld [vmem:[#allocation7] sm:$0xff]
    %v165 = vld [vmem:[#allocation7 + $0x8] sm:$0xff]
    %v166 = vld [vmem:[#allocation7 + $0x10] sm:$0xff]
    %v167 = vld [vmem:[#allocation7 + $0x18] sm:$0xff]
    %v168 = vld [vmem:[#allocation7 + $0x20] sm:$0xff]
    %v169 = vld [vmem:[#allocation7 + $0x28] sm:$0xff]
    %v170 = vld [vmem:[#allocation7 + $0x30] sm:$0xff]
    %v171 = vld [vmem:[#allocation7 + $0x38] sm:$0xff]
    %v172 = vld [vmem:[#allocation7 + $0x40] sm:$0xff]
    %v173 = vld [vmem:[#allocation7 + $0x48] sm:$0xff]
    %v174 = vld [vmem:[#allocation7 + $0x50] sm:$0xff]
    %v175 = vld [vmem:[#allocation7 + $0x58] sm:$0xff]
    %v176 = vld [vmem:[#allocation7 + $0x60] sm:$0xff]
    %v177 = vld [vmem:[#allocation7 + $0x68] sm:$0xff]
    %v178 = vld [vmem:[#allocation7 + $0x70] sm:$0xff]
    %v179 = vld [vmem:[#allocation7 + $0x78] sm:$0xff]
    %v180 = vld [vmem:[#allocation7 + $0x80] sm:$0xff]
    %v181 = vld [vmem:[#allocation7 + $0x88] sm:$0xff]
    %v182 = vld [vmem:[#allocation7 + $0x90] sm:$0xff]
    %v183 = vld [vmem:[#allocation7 + $0x98] sm:$0xff]
    %v184 = vld [vmem:[#allocation7 + $0xa0] sm:$0xff]
    %v185 = vld [vmem:[#allocation7 + $0xa8] sm:$0xff]
    %v186 = vld [vmem:[#allocation7 + $0xb0] sm:$0xff]
    %v187 = vld [vmem:[#allocation7 + $0xb8] sm:$0xff]
    %v188 = vld [vmem:[#allocation7 + $0xc0] sm:$0xff]
    %v189 = vld [vmem:[#allocation7 + $0xc8] sm:$0xff]
    %v190 = vld [vmem:[#allocation7 + $0xd0] sm:$0xff]
    %v191 = vld [vmem:[#allocation7 + $0xd8] sm:$0xff]
    %v192 = vld [vmem:[#allocation7 + $0xe0] sm:$0xff]
    %v193 = vld [vmem:[#allocation7 + $0xe8] sm:$0xff]
    %v194 = vld [vmem:[#allocation7 + $0xf0] sm:$0xff]
    %v195 = vld [vmem:[#allocation7 + $0xf8] sm:$0xff]
    %v196 = vld [vmem:[#allocation7 + $0x100] sm:$0xff]
    %v197 = vld [vmem:[#allocation7 + $0x108] sm:$0xff]
    %v198 = vld [vmem:[#allocation7 + $0x110] sm:$0xff]
    %v199 = vld [vmem:[#allocation7 + $0x118] sm:$0xff]
    %v200 = vld [vmem:[#allocation7 + $0x120] sm:$0xff]
    %v201 = vld [vmem:[#allocation7 + $0x128] sm:$0xff]
    %v202 = vld [vmem:[#allocation7 + $0x130] sm:$0xff]
    %v203 = vld [vmem:[#allocation7 + $0x138] sm:$0xff]
    %v204 = vld [vmem:[#allocation7 + $0x140] sm:$0xff]
    %v205 = vld [vmem:[#allocation7 + $0x148] sm:$0xff]
    %v206 = vld [vmem:[#allocation7 + $0x150] sm:$0xff]
    %v207 = vld [vmem:[#allocation7 + $0x158] sm:$0xff]
    %v208 = vld [vmem:[#allocation7 + $0x160] sm:$0xff]
    %v209 = vld [vmem:[#allocation7 + $0x168] sm:$0xff]
    %v210 = vld [vmem:[#allocation7 + $0x170] sm:$0xff]
    %v211 = vld [vmem:[#allocation7 + $0x178] sm:$0xff]
    %v212 = vld [vmem:[#allocation7 + $0x180] sm:$0xff]
    %v213 = vld [vmem:[#allocation7 + $0x188] sm:$0xff]
    %v214 = vld [vmem:[#allocation7 + $0x190] sm:$0xff]
    %v215 = vld [vmem:[#allocation7 + $0x198] sm:$0xff]
    %v216 = vld [vmem:[#allocation7 + $0x1a0] sm:$0xff]
    %v217 = vld [vmem:[#allocation7 + $0x1a8] sm:$0xff]
    %v218 = vld [vmem:[#allocation7 + $0x1b0] sm:$0xff]
    %v219 = vld [vmem:[#allocation7 + $0x1b8] sm:$0xff]
    %v220 = vld [vmem:[#allocation7 + $0x1c0] sm:$0xff]
    %v221 = vld [vmem:[#allocation7 + $0x1c8] sm:$0xff]
    %v222 = vld [vmem:[#allocation7 + $0x1d0] sm:$0xff]
    %v223 = vld [vmem:[#allocation7 + $0x1d8] sm:$0xff]
    %v224 = vld [vmem:[#allocation7 + $0x1e0] sm:$0xff]
    %v225 = vld [vmem:[#allocation7 + $0x1e8] sm:$0xff]
    %v226 = vld [vmem:[#allocation7 + $0x1f0] sm:$0xff]
    %v227 = vld [vmem:[#allocation7 + $0x1f8] sm:$0xff]
    %v228 = vld [vmem:[%s4] sm:$0xff]
    %v230 = vlaneseq
    %v231 = vshrl.u32 %v230, 7
    %v232 = vsub.s32 0, %v231
    %v233 = vrot.slane %v228, %v232
    %v234 = vlaneseq
    %v235 = vshrl.u32 %v234, 7
    %v236 = vsub.s32 1, %v235
    %v237 = vrot.slane %v228, %v236
    %v238 = vlaneseq
    %v239 = vshrl.u32 %v238, 7
    %v240 = vsub.s32 2, %v239
    %v241 = vrot.slane %v228, %v240
    %v242 = vlaneseq
    %v243 = vshrl.u32 %v242, 7
    %v244 = vsub.s32 3, %v243
    %v245 = vrot.slane %v228, %v244
    %v246 = vlaneseq
    %v247 = vshrl.u32 %v246, 7
    %v248 = vsub.s32 4, %v247
    %v249 = vrot.slane %v228, %v248
    %v250 = vlaneseq
    %v251 = vshrl.u32 %v250, 7
    %v252 = vsub.s32 5, %v251
    %v253 = vrot.slane %v228, %v252
    %v254 = vlaneseq
    %v255 = vshrl.u32 %v254, 7
    %v256 = vsub.s32 6, %v255
    %v257 = vrot.slane %v228, %v256
    %v258 = vlaneseq
    %v259 = vshrl.u32 %v258, 7
    %v260 = vsub.s32 7, %v259
    %v261 = vrot.slane %v228, %v260
    %v334 = vunpack.c.l.b16 %v164
    %v335 = vunpack.c.h.b16 %v164
    %v336 = vunpack.c.l.b16 %v165
    %v337 = vunpack.c.h.b16 %v165
    %v338 = vunpack.c.l.b16 %v166
    %v339 = vunpack.c.h.b16 %v166
    %v340 = vunpack.c.l.b16 %v167
    %v341 = vunpack.c.h.b16 %v167
    %v342 = vunpack.c.l.b16 %v168
    %v343 = vunpack.c.h.b16 %v168
    %v344 = vunpack.c.l.b16 %v169
    %v345 = vunpack.c.h.b16 %v169
    %v346 = vunpack.c.l.b16 %v170
    %v347 = vunpack.c.h.b16 %v170
    %v348 = vunpack.c.l.b16 %v171
    %v349 = vunpack.c.h.b16 %v171
    %v350 = vunpack.c.l.b16 %v172
    %v351 = vunpack.c.h.b16 %v172
    %v352 = vunpack.c.l.b16 %v173
    %v353 = vunpack.c.h.b16 %v173
    %v354 = vunpack.c.l.b16 %v174
    %v355 = vunpack.c.h.b16 %v174
    %v356 = vunpack.c.l.b16 %v175
    %v357 = vunpack.c.h.b16 %v175
    %v358 = vunpack.c.l.b16 %v176
    %v359 = vunpack.c.h.b16 %v176
    %v360 = vunpack.c.l.b16 %v177
    %v361 = vunpack.c.h.b16 %v177
    %v362 = vunpack.c.l.b16 %v178
    %v363 = vunpack.c.h.b16 %v178
    %v364 = vunpack.c.l.b16 %v179
    %v365 = vunpack.c.h.b16 %v179
    %v366 = vunpack.c.l.b16 %v180
    %v367 = vunpack.c.h.b16 %v180
    %v368 = vunpack.c.l.b16 %v181
    %v369 = vunpack.c.h.b16 %v181
    %v370 = vunpack.c.l.b16 %v182
    %v371 = vunpack.c.h.b16 %v182
    %v372 = vunpack.c.l.b16 %v183
    %v373 = vunpack.c.h.b16 %v183
    %v374 = vunpack.c.l.b16 %v184
    %v375 = vunpack.c.h.b16 %v184
    %v376 = vunpack.c.l.b16 %v185
    %v377 = vunpack.c.h.b16 %v185
    %v378 = vunpack.c.l.b16 %v186
    %v379 = vunpack.c.h.b16 %v186
    %v380 = vunpack.c.l.b16 %v187
    %v381 = vunpack.c.h.b16 %v187
    %v382 = vunpack.c.l.b16 %v188
    %v383 = vunpack.c.h.b16 %v188
    %v384 = vunpack.c.l.b16 %v189
    %v385 = vunpack.c.h.b16 %v189
    %v386 = vunpack.c.l.b16 %v190
    %v387 = vunpack.c.h.b16 %v190
    %v388 = vunpack.c.l.b16 %v191
    %v389 = vunpack.c.h.b16 %v191
    %v390 = vunpack.c.l.b16 %v192
    %v391 = vunpack.c.h.b16 %v192
    %v392 = vunpack.c.l.b16 %v193
    %v393 = vunpack.c.h.b16 %v193
    %v394 = vunpack.c.l.b16 %v194
    %v395 = vunpack.c.h.b16 %v194
    %v396 = vunpack.c.l.b16 %v195
    %v397 = vunpack.c.h.b16 %v195
    %v398 = vunpack.c.l.b16 %v196
    %v399 = vunpack.c.h.b16 %v196
    %v400 = vunpack.c.l.b16 %v197
    %v401 = vunpack.c.h.b16 %v197
    %v402 = vunpack.c.l.b16 %v198
    %v403 = vunpack.c.h.b16 %v198
    %v404 = vunpack.c.l.b16 %v199
    %v405 = vunpack.c.h.b16 %v199
    %v406 = vunpack.c.l.b16 %v200
    %v407 = vunpack.c.h.b16 %v200
    %v408 = vunpack.c.l.b16 %v201
    %v409 = vunpack.c.h.b16 %v201
    %v410 = vunpack.c.l.b16 %v202
    %v411 = vunpack.c.h.b16 %v202
    %v412 = vunpack.c.l.b16 %v203
    %v413 = vunpack.c.h.b16 %v203
    %v414 = vunpack.c.l.b16 %v204
    %v415 = vunpack.c.h.b16 %v204
    %v416 = vunpack.c.l.b16 %v205
    %v417 = vunpack.c.h.b16 %v205
    %v418 = vunpack.c.l.b16 %v206
    %v419 = vunpack.c.h.b16 %v206
    %v420 = vunpack.c.l.b16 %v207
    %v421 = vunpack.c.h.b16 %v207
    %v422 = vunpack.c.l.b16 %v208
    %v423 = vunpack.c.h.b16 %v208
    %v424 = vunpack.c.l.b16 %v209
    %v425 = vunpack.c.h.b16 %v209
    %v426 = vunpack.c.l.b16 %v210
    %v427 = vunpack.c.h.b16 %v210
    %v428 = vunpack.c.l.b16 %v211
    %v429 = vunpack.c.h.b16 %v211
    %v430 = vunpack.c.l.b16 %v212
    %v431 = vunpack.c.h.b16 %v212
    %v432 = vunpack.c.l.b16 %v213
    %v433 = vunpack.c.h.b16 %v213
    %v434 = vunpack.c.l.b16 %v214
    %v435 = vunpack.c.h.b16 %v214
    %v436 = vunpack.c.l.b16 %v215
    %v437 = vunpack.c.h.b16 %v215
    %v438 = vunpack.c.l.b16 %v216
    %v439 = vunpack.c.h.b16 %v216
    %v440 = vunpack.c.l.b16 %v217
    %v441 = vunpack.c.h.b16 %v217
    %v442 = vunpack.c.l.b16 %v218
    %v443 = vunpack.c.h.b16 %v218
    %v444 = vunpack.c.l.b16 %v219
    %v445 = vunpack.c.h.b16 %v219
    %v446 = vunpack.c.l.b16 %v220
    %v447 = vunpack.c.h.b16 %v220
    %v448 = vunpack.c.l.b16 %v221
    %v449 = vunpack.c.h.b16 %v221
    %v450 = vunpack.c.l.b16 %v222
    %v451 = vunpack.c.h.b16 %v222
    %v452 = vunpack.c.l.b16 %v223
    %v453 = vunpack.c.h.b16 %v223
    %v454 = vunpack.c.l.b16 %v224
    %v455 = vunpack.c.h.b16 %v224
    %v456 = vunpack.c.l.b16 %v225
    %v457 = vunpack.c.h.b16 %v225
    %v458 = vunpack.c.l.b16 %v226
    %v459 = vunpack.c.h.b16 %v226
    %v460 = vunpack.c.l.b16 %v227
    %v461 = vunpack.c.h.b16 %v227
    %v462 = vpack.c.b16 %v342, %v334
    %v463 = vpack.c.b16 %v343, %v335
    %v464 = vpack.c.b16 %v344, %v336
    %v465 = vpack.c.b16 %v345, %v337
    %v466 = vpack.c.b16 %v346, %v338
    %v467 = vpack.c.b16 %v347, %v339
    %v468 = vpack.c.b16 %v348, %v340
    %v469 = vpack.c.b16 %v349, %v341
    %v470 = vpack.c.b16 %v358, %v350
    %v471 = vpack.c.b16 %v359, %v351
    %v472 = vpack.c.b16 %v360, %v352
    %v473 = vpack.c.b16 %v361, %v353
    %v474 = vpack.c.b16 %v362, %v354
    %v475 = vpack.c.b16 %v363, %v355
    %v476 = vpack.c.b16 %v364, %v356
    %v477 = vpack.c.b16 %v365, %v357
    %v478 = vpack.c.b16 %v374, %v366
    %v479 = vpack.c.b16 %v375, %v367
    %v480 = vpack.c.b16 %v376, %v368
    %v481 = vpack.c.b16 %v377, %v369
    %v482 = vpack.c.b16 %v378, %v370
    %v483 = vpack.c.b16 %v379, %v371
    %v484 = vpack.c.b16 %v380, %v372
    %v485 = vpack.c.b16 %v381, %v373
    %v486 = vpack.c.b16 %v390, %v382
    %v487 = vpack.c.b16 %v391, %v383
    %v488 = vpack.c.b16 %v392, %v384
    %v489 = vpack.c.b16 %v393, %v385
    %v490 = vpack.c.b16 %v394, %v386
    %v491 = vpack.c.b16 %v395, %v387
    %v492 = vpack.c.b16 %v396, %v388
    %v493 = vpack.c.b16 %v397, %v389
    %v494 = vpack.c.b16 %v406, %v398
    %v495 = vpack.c.b16 %v407, %v399
    %v496 = vpack.c.b16 %v408, %v400
    %v497 = vpack.c.b16 %v409, %v401
    %v498 = vpack.c.b16 %v410, %v402
    %v499 = vpack.c.b16 %v411, %v403
    %v500 = vpack.c.b16 %v412, %v404
    %v501 = vpack.c.b16 %v413, %v405
    %v502 = vpack.c.b16 %v422, %v414
    %v503 = vpack.c.b16 %v423, %v415
    %v504 = vpack.c.b16 %v424, %v416
    %v505 = vpack.c.b16 %v425, %v417
    %v506 = vpack.c.b16 %v426, %v418
    %v507 = vpack.c.b16 %v427, %v419
    %v508 = vpack.c.b16 %v428, %v420
    %v509 = vpack.c.b16 %v429, %v421
    %v510 = vpack.c.b16 %v438, %v430
    %v511 = vpack.c.b16 %v439, %v431
    %v512 = vpack.c.b16 %v440, %v432
    %v513 = vpack.c.b16 %v441, %v433
    %v514 = vpack.c.b16 %v442, %v434
    %v515 = vpack.c.b16 %v443, %v435
    %v516 = vpack.c.b16 %v444, %v436
    %v517 = vpack.c.b16 %v445, %v437
    %v518 = vpack.c.b16 %v454, %v446
    %v519 = vpack.c.b16 %v455, %v447
    %v520 = vpack.c.b16 %v456, %v448
    %v521 = vpack.c.b16 %v457, %v449
    %v522 = vpack.c.b16 %v458, %v450
    %v523 = vpack.c.b16 %v459, %v451
    %v524 = vpack.c.b16 %v460, %v452
    %v525 = vpack.c.b16 %v461, %v453
    %590 = vmatprep.subr.bf16.mxu0 %v463
    %591 = vmatpush1.bf16.msra.mxu0 %v462
    %592 = vmatprep.subr.bf16.mxu0 %v471
    %593 = vmatpush1.bf16.msra.mxu0 %v470
    %594 = vmatprep.subr.bf16.mxu0 %v479
    %595 = vmatpush1.bf16.msra.mxu0 %v478
    %596 = vmatprep.subr.bf16.mxu0 %v487
    %597 = vmatpush1.bf16.msra.mxu0 %v486
    %598 = vmatprep.subr.bf16.mxu0 %v495
    %599 = vmatpush1.bf16.msra.mxu0 %v494
    %600 = vmatprep.subr.bf16.mxu0 %v503
    %601 = vmatpush1.bf16.msra.mxu0 %v502
    %602 = vmatprep.subr.bf16.mxu0 %v511
    %603 = vmatpush1.bf16.msra.mxu0 %v510
    %604 = vmatprep.subr.bf16.mxu0 %v519
    %605 = vmatpush1.bf16.msra.mxu0 %v518
    %606 = vmatprep.subr.bf16.mxu0 0
    %607 = vmatpush1.bf16.msra.mxu0 0
    %608 = vmatprep.subr.bf16.mxu0 0
    %609 = vmatpush1.bf16.msra.mxu0 0
    %610 = vmatprep.subr.bf16.mxu0 0
    %611 = vmatpush1.bf16.msra.mxu0 0
    %612 = vmatprep.subr.bf16.mxu0 0
    %613 = vmatpush1.bf16.msra.mxu0 0
    %614 = vmatprep.subr.bf16.mxu0 0
    %615 = vmatpush1.bf16.msra.mxu0 0
    %616 = vmatprep.subr.bf16.mxu0 0
    %617 = vmatpush1.bf16.msra.mxu0 0
    %618 = vmatprep.subr.bf16.mxu0 0
    %619 = vmatpush1.bf16.msra.mxu0 0
    %620 = vmatprep.subr.bf16.mxu0 0
    %621 = vmatpush1.bf16.msra.mxu0 0
    %622 = vmatprep.mubr.bf16.mxu0 0
    %623 = vmatmul.mubr.bf16.gmra.mrb[0].mxu0 %v163
    %v624 = vpop.f32.mrb[0].mxu0
    %v625 = vadd.f32 %v233, %v624
    %v626 = vpop.f32.mrb[0].mxu0
    %v627 = vadd.f32 %v237, %v626
    %v628 = vpop.f32.mrb[0].mxu0
    %v629 = vpop.f32.mrb[0].mxu0
    %630 = vdwg.mxu0
    %631 = vmatprep.subr.bf16.mxu0 %v465
    %632 = vmatpush1.bf16.msra.mxu0 %v464
    %633 = vmatprep.subr.bf16.mxu0 %v473
    %634 = vmatpush1.bf16.msra.mxu0 %v472
    %635 = vmatprep.subr.bf16.mxu0 %v481
    %636 = vmatpush1.bf16.msra.mxu0 %v480
    %637 = vmatprep.subr.bf16.mxu0 %v489
    %638 = vmatpush1.bf16.msra.mxu0 %v488
    %639 = vmatprep.subr.bf16.mxu0 %v497
    %640 = vmatpush1.bf16.msra.mxu0 %v496
    %641 = vmatprep.subr.bf16.mxu0 %v505
    %642 = vmatpush1.bf16.msra.mxu0 %v504
    %643 = vmatprep.subr.bf16.mxu0 %v513
    %644 = vmatpush1.bf16.msra.mxu0 %v512
    %645 = vmatprep.subr.bf16.mxu0 %v521
    %646 = vmatpush1.bf16.msra.mxu0 %v520
    %647 = vmatprep.subr.bf16.mxu0 0
    %648 = vmatpush1.bf16.msra.mxu0 0
    %649 = vmatprep.subr.bf16.mxu0 0
    %650 = vmatpush1.bf16.msra.mxu0 0
    %651 = vmatprep.subr.bf16.mxu0 0
    %652 = vmatpush1.bf16.msra.mxu0 0
    %653 = vmatprep.subr.bf16.mxu0 0
    %654 = vmatpush1.bf16.msra.mxu0 0
    %655 = vmatprep.subr.bf16.mxu0 0
    %656 = vmatpush1.bf16.msra.mxu0 0
    %657 = vmatprep.subr.bf16.mxu0 0
    %658 = vmatpush1.bf16.msra.mxu0 0
    %659 = vmatprep.subr.bf16.mxu0 0
    %660 = vmatpush1.bf16.msra.mxu0 0
    %661 = vmatprep.subr.bf16.mxu0 0
    %662 = vmatpush1.bf16.msra.mxu0 0
    %663 = vmatprep.mubr.bf16.mxu0 0
    %664 = vmatmul.mubr.bf16.gmra.mrb[0].mxu0 %v163
    %v665 = vpop.f32.mrb[0].mxu0
    %v666 = vadd.f32 %v241, %v665
    %v667 = vpop.f32.mrb[0].mxu0
    %v668 = vadd.f32 %v245, %v667
    %v669 = vpop.f32.mrb[0].mxu0
    %v670 = vpop.f32.mrb[0].mxu0
    %671 = vdwg.mxu0
    %672 = vmatprep.subr.bf16.mxu0 %v467
    %673 = vmatpush1.bf16.msra.mxu0 %v466
    %674 = vmatprep.subr.bf16.mxu0 %v475
    %675 = vmatpush1.bf16.msra.mxu0 %v474
    %676 = vmatprep.subr.bf16.mxu0 %v483
    %677 = vmatpush1.bf16.msra.mxu0 %v482
    %678 = vmatprep.subr.bf16.mxu0 %v491
    %679 = vmatpush1.bf16.msra.mxu0 %v490
    %680 = vmatprep.subr.bf16.mxu0 %v499
    %681 = vmatpush1.bf16.msra.mxu0 %v498
    %682 = vmatprep.subr.bf16.mxu0 %v507
    %683 = vmatpush1.bf16.msra.mxu0 %v506
    %684 = vmatprep.subr.bf16.mxu0 %v515
    %685 = vmatpush1.bf16.msra.mxu0 %v514
    %686 = vmatprep.subr.bf16.mxu0 %v523
    %687 = vmatpush1.bf16.msra.mxu0 %v522
    %688 = vmatprep.subr.bf16.mxu0 0
    %689 = vmatpush1.bf16.msra.mxu0 0
    %690 = vmatprep.subr.bf16.mxu0 0
    %691 = vmatpush1.bf16.msra.mxu0 0
    %692 = vmatprep.subr.bf16.mxu0 0
    %693 = vmatpush1.bf16.msra.mxu0 0
    %694 = vmatprep.subr.bf16.mxu0 0
    %695 = vmatpush1.bf16.msra.mxu0 0
    %696 = vmatprep.subr.bf16.mxu0 0
    %697 = vmatpush1.bf16.msra.mxu0 0
    %698 = vmatprep.subr.bf16.mxu0 0
    %699 = vmatpush1.bf16.msra.mxu0 0
    %700 = vmatprep.subr.bf16.mxu0 0
    %701 = vmatpush1.bf16.msra.mxu0 0
    %702 = vmatprep.subr.bf16.mxu0 0
    %703 = vmatpush1.bf16.msra.mxu0 0
    %704 = vmatprep.mubr.bf16.mxu0 0
    %705 = vmatmul.mubr.bf16.gmra.mrb[0].mxu0 %v163
    %v706 = vpop.f32.mrb[0].mxu0
    %v707 = vadd.f32 %v249, %v706
    %v708 = vpop.f32.mrb[0].mxu0
    %v709 = vadd.f32 %v253, %v708
    %v710 = vpop.f32.mrb[0].mxu0
    %v711 = vpop.f32.mrb[0].mxu0
    %712 = vdwg.mxu0
    %713 = vmatprep.subr.bf16.mxu0 %v469
    %714 = vmatpush1.bf16.msra.mxu0 %v468
    %715 = vmatprep.subr.bf16.mxu0 %v477
    %716 = vmatpush1.bf16.msra.mxu0 %v476
    %717 = vmatprep.subr.bf16.mxu0 %v485
    %718 = vmatpush1.bf16.msra.mxu0 %v484
    %719 = vmatprep.subr.bf16.mxu0 %v493
    %720 = vmatpush1.bf16.msra.mxu0 %v492
    %721 = vmatprep.subr.bf16.mxu0 %v501
    %722 = vmatpush1.bf16.msra.mxu0 %v500
    %723 = vmatprep.subr.bf16.mxu0 %v509
    %724 = vmatpush1.bf16.msra.mxu0 %v508
    %725 = vmatprep.subr.bf16.mxu0 %v517
    %726 = vmatpush1.bf16.msra.mxu0 %v516
    %727 = vmatprep.subr.bf16.mxu0 %v525
    %728 = vmatpush1.bf16.msra.mxu0 %v524
    %729 = vmatprep.subr.bf16.mxu0 0
    %730 = vmatpush1.bf16.msra.mxu0 0
    %731 = vmatprep.subr.bf16.mxu0 0
    %732 = vmatpush1.bf16.msra.mxu0 0
    %733 = vmatprep.subr.bf16.mxu0 0
    %734 = vmatpush1.bf16.msra.mxu0 0
    %735 = vmatprep.subr.bf16.mxu0 0
    %736 = vmatpush1.bf16.msra.mxu0 0
    %737 = vmatprep.subr.bf16.mxu0 0
    %738 = vmatpush1.bf16.msra.mxu0 0
    %739 = vmatprep.subr.bf16.mxu0 0
    %740 = vmatpush1.bf16.msra.mxu0 0
    %741 = vmatprep.subr.bf16.mxu0 0
    %742 = vmatpush1.bf16.msra.mxu0 0
    %743 = vmatprep.subr.bf16.mxu0 0
    %744 = vmatpush1.bf16.msra.mxu0 0
    %745 = vmatprep.mubr.bf16.mxu0 0
    %746 = vmatmul.mubr.bf16.gmra.mrb[0].mxu0 %v163
    %v747 = vpop.f32.mrb[0].mxu0
    %v748 = vadd.f32 %v257, %v747
    %v749 = vpop.f32.mrb[0].mxu0
    %v750 = vadd.f32 %v261, %v749
    %v751 = vpop.f32.mrb[0].mxu0
    %v752 = vpop.f32.mrb[0].mxu0
    %753 = vdwg.mxu0
    %v754 = vmax.f32 %v625, 0.0
    %v755 = vmax.f32 %v627, 0.0
    %v756 = vmax.f32 %v666, 0.0
    %v757 = vmax.f32 %v668, 0.0
    %v758 = vmax.f32 %v707, 0.0
    %v759 = vmax.f32 %v709, 0.0
    %v760 = vmax.f32 %v748, 0.0
    %v761 = vmax.f32 %v750, 0.0
    %v762 = vpack.c.bf16 %v754, %v754
    %v763 = vpack.c.bf16 %v755, %v755
    %v764 = vpack.c.bf16 %v756, %v756
    %v765 = vpack.c.bf16 %v757, %v757
    %v766 = vpack.c.bf16 %v758, %v758
    %v767 = vpack.c.bf16 %v759, %v759
    %v768 = vpack.c.bf16 %v760, %v760
    %v769 = vpack.c.bf16 %v761, %v761
    %v770 = vld [vmem:[#allocation8] sm:$0xf]
    %v771 = vld [vmem:[#allocation8 + $0x4] sm:$0xf]
    %v772 = vld [vmem:[#allocation8 + $0x8] sm:$0xf]
    %v773 = vld [vmem:[#allocation8 + $0xc] sm:$0xf]
    %v774 = vld [vmem:[#allocation8 + $0x10] sm:$0xf]
    %v775 = vld [vmem:[#allocation8 + $0x14] sm:$0xf]
    %v776 = vld [vmem:[#allocation8 + $0x18] sm:$0xf]
    %v777 = vld [vmem:[#allocation8 + $0x1c] sm:$0xf]
    %v778 = vld [vmem:[#allocation8 + $0x20] sm:$0xf]
    %v779 = vld [vmem:[#allocation8 + $0x24] sm:$0xf]
    %v780 = vld [vmem:[#allocation8 + $0x28] sm:$0xf]
    %v781 = vld [vmem:[#allocation8 + $0x2c] sm:$0xf]
    %v782 = vld [vmem:[#allocation8 + $0x30] sm:$0xf]
    %v783 = vld [vmem:[#allocation8 + $0x34] sm:$0xf]
    %v784 = vld [vmem:[#allocation8 + $0x38] sm:$0xf]
    %v785 = vld [vmem:[#allocation8 + $0x3c] sm:$0xf]
    %v786 = vld [vmem:[#allocation8 + $0x40] sm:$0xf]
    %v787 = vld [vmem:[#allocation8 + $0x44] sm:$0xf]
    %v788 = vld [vmem:[#allocation8 + $0x48] sm:$0xf]
    %v789 = vld [vmem:[#allocation8 + $0x4c] sm:$0xf]
    %v790 = vld [vmem:[#allocation8 + $0x50] sm:$0xf]
    %v791 = vld [vmem:[#allocation8 + $0x54] sm:$0xf]
    %v792 = vld [vmem:[#allocation8 + $0x58] sm:$0xf]
    %v793 = vld [vmem:[#allocation8 + $0x5c] sm:$0xf]
    %v794 = vld [vmem:[#allocation8 + $0x60] sm:$0xf]
    %v795 = vld [vmem:[#allocation8 + $0x64] sm:$0xf]
    %v796 = vld [vmem:[#allocation8 + $0x68] sm:$0xf]
    %v797 = vld [vmem:[#allocation8 + $0x6c] sm:$0xf]
    %v798 = vld [vmem:[#allocation8 + $0x70] sm:$0xf]
    %v799 = vld [vmem:[#allocation8 + $0x74] sm:$0xf]
    %v800 = vld [vmem:[#allocation8 + $0x78] sm:$0xf]
    %v801 = vld [vmem:[#allocation8 + $0x7c] sm:$0xf]
    %v802 = vld [vmem:[#allocation8 + $0x80] sm:$0xf]
    %v803 = vld [vmem:[#allocation8 + $0x84] sm:$0xf]
    %v804 = vld [vmem:[#allocation8 + $0x88] sm:$0xf]
    %v805 = vld [vmem:[#allocation8 + $0x8c] sm:$0xf]
    %v806 = vld [vmem:[#allocation8 + $0x90] sm:$0xf]
    %v807 = vld [vmem:[#allocation8 + $0x94] sm:$0xf]
    %v808 = vld [vmem:[#allocation8 + $0x98] sm:$0xf]
    %v809 = vld [vmem:[#allocation8 + $0x9c] sm:$0xf]
    %v810 = vld [vmem:[#allocation8 + $0xa0] sm:$0xf]
    %v811 = vld [vmem:[#allocation8 + $0xa4] sm:$0xf]
    %v812 = vld [vmem:[#allocation8 + $0xa8] sm:$0xf]
    %v813 = vld [vmem:[#allocation8 + $0xac] sm:$0xf]
    %v814 = vld [vmem:[#allocation8 + $0xb0] sm:$0xf]
    %v815 = vld [vmem:[#allocation8 + $0xb4] sm:$0xf]
    %v816 = vld [vmem:[#allocation8 + $0xb8] sm:$0xf]
    %v817 = vld [vmem:[#allocation8 + $0xbc] sm:$0xf]
    %v818 = vld [vmem:[#allocation8 + $0xc0] sm:$0xf]
    %v819 = vld [vmem:[#allocation8 + $0xc4] sm:$0xf]
    %v820 = vld [vmem:[#allocation8 + $0xc8] sm:$0xf]
    %v821 = vld [vmem:[#allocation8 + $0xcc] sm:$0xf]
    %v822 = vld [vmem:[#allocation8 + $0xd0] sm:$0xf]
    %v823 = vld [vmem:[#allocation8 + $0xd4] sm:$0xf]
    %v824 = vld [vmem:[#allocation8 + $0xd8] sm:$0xf]
    %v825 = vld [vmem:[#allocation8 + $0xdc] sm:$0xf]
    %v826 = vld [vmem:[#allocation8 + $0xe0] sm:$0xf]
    %v827 = vld [vmem:[#allocation8 + $0xe4] sm:$0xf]
    %v828 = vld [vmem:[#allocation8 + $0xe8] sm:$0xf]
    %v829 = vld [vmem:[#allocation8 + $0xec] sm:$0xf]
    %v830 = vld [vmem:[#allocation8 + $0xf0] sm:$0xf]
    %v831 = vld [vmem:[#allocation8 + $0xf4] sm:$0xf]
    %v832 = vld [vmem:[#allocation8 + $0xf8] sm:$0xf]
    %v833 = vld [vmem:[#allocation8 + $0xfc] sm:$0xf]
    %v834 = vld [vmem:[#allocation8 + $0x100] sm:$0xf]
    %v835 = vld [vmem:[#allocation8 + $0x104] sm:$0xf]
    %v836 = vld [vmem:[#allocation8 + $0x108] sm:$0xf]
    %v837 = vld [vmem:[#allocation8 + $0x10c] sm:$0xf]
    %v838 = vld [vmem:[#allocation8 + $0x110] sm:$0xf]
    %v839 = vld [vmem:[#allocation8 + $0x114] sm:$0xf]
    %v840 = vld [vmem:[#allocation8 + $0x118] sm:$0xf]
    %v841 = vld [vmem:[#allocation8 + $0x11c] sm:$0xf]
    %v842 = vld [vmem:[#allocation8 + $0x120] sm:$0xf]
    %v843 = vld [vmem:[#allocation8 + $0x124] sm:$0xf]
    %v844 = vld [vmem:[#allocation8 + $0x128] sm:$0xf]
    %v845 = vld [vmem:[#allocation8 + $0x12c] sm:$0xf]
    %v846 = vld [vmem:[#allocation8 + $0x130] sm:$0xf]
    %v847 = vld [vmem:[#allocation8 + $0x134] sm:$0xf]
    %v848 = vld [vmem:[#allocation8 + $0x138] sm:$0xf]
    %v849 = vld [vmem:[#allocation8 + $0x13c] sm:$0xf]
    %v850 = vld [vmem:[#allocation8 + $0x140] sm:$0xf]
    %v851 = vld [vmem:[#allocation8 + $0x144] sm:$0xf]
    %v852 = vld [vmem:[#allocation8 + $0x148] sm:$0xf]
    %v853 = vld [vmem:[#allocation8 + $0x14c] sm:$0xf]
    %v854 = vld [vmem:[#allocation8 + $0x150] sm:$0xf]
    %v855 = vld [vmem:[#allocation8 + $0x154] sm:$0xf]
    %v856 = vld [vmem:[#allocation8 + $0x158] sm:$0xf]
    %v857 = vld [vmem:[#allocation8 + $0x15c] sm:$0xf]
    %v858 = vld [vmem:[#allocation8 + $0x160] sm:$0xf]
    %v859 = vld [vmem:[#allocation8 + $0x164] sm:$0xf]
    %v860 = vld [vmem:[#allocation8 + $0x168] sm:$0xf]
    %v861 = vld [vmem:[#allocation8 + $0x16c] sm:$0xf]
    %v862 = vld [vmem:[#allocation8 + $0x170] sm:$0xf]
    %v863 = vld [vmem:[#allocation8 + $0x174] sm:$0xf]
    %v864 = vld [vmem:[#allocation8 + $0x178] sm:$0xf]
    %v865 = vld [vmem:[#allocation8 + $0x17c] sm:$0xf]
    %v866 = vld [vmem:[#allocation8 + $0x180] sm:$0xf]
    %v867 = vld [vmem:[#allocation8 + $0x184] sm:$0xf]
    %v868 = vld [vmem:[#allocation8 + $0x188] sm:$0xf]
    %v869 = vld [vmem:[#allocation8 + $0x18c] sm:$0xf]
    %v870 = vld [vmem:[#allocation8 + $0x190] sm:$0xf]
    %v871 = vld [vmem:[#allocation8 + $0x194] sm:$0xf]
    %v872 = vld [vmem:[#allocation8 + $0x198] sm:$0xf]
    %v873 = vld [vmem:[#allocation8 + $0x19c] sm:$0xf]
    %v874 = vld [vmem:[#allocation8 + $0x1a0] sm:$0xf]
    %v875 = vld [vmem:[#allocation8 + $0x1a4] sm:$0xf]
    %v876 = vld [vmem:[#allocation8 + $0x1a8] sm:$0xf]
    %v877 = vld [vmem:[#allocation8 + $0x1ac] sm:$0xf]
    %v878 = vld [vmem:[#allocation8 + $0x1b0] sm:$0xf]
    %v879 = vld [vmem:[#allocation8 + $0x1b4] sm:$0xf]
    %v880 = vld [vmem:[#allocation8 + $0x1b8] sm:$0xf]
    %v881 = vld [vmem:[#allocation8 + $0x1bc] sm:$0xf]
    %v882 = vld [vmem:[#allocation8 + $0x1c0] sm:$0xf]
    %v883 = vld [vmem:[#allocation8 + $0x1c4] sm:$0xf]
    %v884 = vld [vmem:[#allocation8 + $0x1c8] sm:$0xf]
    %v885 = vld [vmem:[#allocation8 + $0x1cc] sm:$0xf]
    %v886 = vld [vmem:[#allocation8 + $0x1d0] sm:$0xf]
    %v887 = vld [vmem:[#allocation8 + $0x1d4] sm:$0xf]
    %v888 = vld [vmem:[#allocation8 + $0x1d8] sm:$0xf]
    %v889 = vld [vmem:[#allocation8 + $0x1dc] sm:$0xf]
    %v890 = vld [vmem:[#allocation8 + $0x1e0] sm:$0xf]
    %v891 = vld [vmem:[#allocation8 + $0x1e4] sm:$0xf]
    %v892 = vld [vmem:[#allocation8 + $0x1e8] sm:$0xf]
    %v893 = vld [vmem:[#allocation8 + $0x1ec] sm:$0xf]
    %v894 = vld [vmem:[#allocation8 + $0x1f0] sm:$0xf]
    %v895 = vld [vmem:[#allocation8 + $0x1f4] sm:$0xf]
    %v896 = vld [vmem:[#allocation8 + $0x1f8] sm:$0xf]
    %v897 = vld [vmem:[#allocation8 + $0x1fc] sm:$0xf]
    %v898 = vld [vmem:[%s6] sm:$0x1]
    %v900 = vlaneseq
    %v901 = vshrl.u32 %v900, 7
    %v902 = vsub.s32 0, %v901
    %v903 = vrot.slane %v898, %v902
    %v1033 = vunpack.c.l.b16 %v770
    %v1034 = vunpack.c.l.b16 %v771
    %v1035 = vunpack.c.l.b16 %v772
    %v1036 = vunpack.c.l.b16 %v773
    %v1037 = vunpack.c.l.b16 %v774
    %v1038 = vunpack.c.l.b16 %v775
    %v1039 = vunpack.c.l.b16 %v776
    %v1040 = vunpack.c.l.b16 %v777
    %v1041 = vunpack.c.l.b16 %v778
    %v1042 = vunpack.c.l.b16 %v779
    %v1043 = vunpack.c.l.b16 %v780
    %v1044 = vunpack.c.l.b16 %v781
    %v1045 = vunpack.c.l.b16 %v782
    %v1046 = vunpack.c.l.b16 %v783
    %v1047 = vunpack.c.l.b16 %v784
    %v1048 = vunpack.c.l.b16 %v785
    %v1049 = vunpack.c.l.b16 %v786
    %v1050 = vunpack.c.l.b16 %v787
    %v1051 = vunpack.c.l.b16 %v788
    %v1052 = vunpack.c.l.b16 %v789
    %v1053 = vunpack.c.l.b16 %v790
    %v1054 = vunpack.c.l.b16 %v791
    %v1055 = vunpack.c.l.b16 %v792
    %v1056 = vunpack.c.l.b16 %v793
    %v1057 = vunpack.c.l.b16 %v794
    %v1058 = vunpack.c.l.b16 %v795
    %v1059 = vunpack.c.l.b16 %v796
    %v1060 = vunpack.c.l.b16 %v797
    %v1061 = vunpack.c.l.b16 %v798
    %v1062 = vunpack.c.l.b16 %v799
    %v1063 = vunpack.c.l.b16 %v800
    %v1064 = vunpack.c.l.b16 %v801
    %v1065 = vunpack.c.l.b16 %v802
    %v1066 = vunpack.c.l.b16 %v803
    %v1067 = vunpack.c.l.b16 %v804
    %v1068 = vunpack.c.l.b16 %v805
    %v1069 = vunpack.c.l.b16 %v806
    %v1070 = vunpack.c.l.b16 %v807
    %v1071 = vunpack.c.l.b16 %v808
    %v1072 = vunpack.c.l.b16 %v809
    %v1073 = vunpack.c.l.b16 %v810
    %v1074 = vunpack.c.l.b16 %v811
    %v1075 = vunpack.c.l.b16 %v812
    %v1076 = vunpack.c.l.b16 %v813
    %v1077 = vunpack.c.l.b16 %v814
    %v1078 = vunpack.c.l.b16 %v815
    %v1079 = vunpack.c.l.b16 %v816
    %v1080 = vunpack.c.l.b16 %v817
    %v1081 = vunpack.c.l.b16 %v818
    %v1082 = vunpack.c.l.b16 %v819
    %v1083 = vunpack.c.l.b16 %v820
    %v1084 = vunpack.c.l.b16 %v821
    %v1085 = vunpack.c.l.b16 %v822
    %v1086 = vunpack.c.l.b16 %v823
    %v1087 = vunpack.c.l.b16 %v824
    %v1088 = vunpack.c.l.b16 %v825
    %v1089 = vunpack.c.l.b16 %v826
    %v1090 = vunpack.c.l.b16 %v827
    %v1091 = vunpack.c.l.b16 %v828
    %v1092 = vunpack.c.l.b16 %v829
    %v1093 = vunpack.c.l.b16 %v830
    %v1094 = vunpack.c.l.b16 %v831
    %v1095 = vunpack.c.l.b16 %v832
    %v1096 = vunpack.c.l.b16 %v833
    %v1097 = vunpack.c.l.b16 %v834
    %v1098 = vunpack.c.l.b16 %v835
    %v1099 = vunpack.c.l.b16 %v836
    %v1100 = vunpack.c.l.b16 %v837
    %v1101 = vunpack.c.l.b16 %v838
    %v1102 = vunpack.c.l.b16 %v839
    %v1103 = vunpack.c.l.b16 %v840
    %v1104 = vunpack.c.l.b16 %v841
    %v1105 = vunpack.c.l.b16 %v842
    %v1106 = vunpack.c.l.b16 %v843
    %v1107 = vunpack.c.l.b16 %v844
    %v1108 = vunpack.c.l.b16 %v845
    %v1109 = vunpack.c.l.b16 %v846
    %v1110 = vunpack.c.l.b16 %v847
    %v1111 = vunpack.c.l.b16 %v848
    %v1112 = vunpack.c.l.b16 %v849
    %v1113 = vunpack.c.l.b16 %v850
    %v1114 = vunpack.c.l.b16 %v851
    %v1115 = vunpack.c.l.b16 %v852
    %v1116 = vunpack.c.l.b16 %v853
    %v1117 = vunpack.c.l.b16 %v854
    %v1118 = vunpack.c.l.b16 %v855
    %v1119 = vunpack.c.l.b16 %v856
    %v1120 = vunpack.c.l.b16 %v857
    %v1121 = vunpack.c.l.b16 %v858
    %v1122 = vunpack.c.l.b16 %v859
    %v1123 = vunpack.c.l.b16 %v860
    %v1124 = vunpack.c.l.b16 %v861
    %v1125 = vunpack.c.l.b16 %v862
    %v1126 = vunpack.c.l.b16 %v863
    %v1127 = vunpack.c.l.b16 %v864
    %v1128 = vunpack.c.l.b16 %v865
    %v1129 = vunpack.c.l.b16 %v866
    %v1130 = vunpack.c.l.b16 %v867
    %v1131 = vunpack.c.l.b16 %v868
    %v1132 = vunpack.c.l.b16 %v869
    %v1133 = vunpack.c.l.b16 %v870
    %v1134 = vunpack.c.l.b16 %v871
    %v1135 = vunpack.c.l.b16 %v872
    %v1136 = vunpack.c.l.b16 %v873
    %v1137 = vunpack.c.l.b16 %v874
    %v1138 = vunpack.c.l.b16 %v875
    %v1139 = vunpack.c.l.b16 %v876
    %v1140 = vunpack.c.l.b16 %v877
    %v1141 = vunpack.c.l.b16 %v878
    %v1142 = vunpack.c.l.b16 %v879
    %v1143 = vunpack.c.l.b16 %v880
    %v1144 = vunpack.c.l.b16 %v881
    %v1145 = vunpack.c.l.b16 %v882
    %v1146 = vunpack.c.l.b16 %v883
    %v1147 = vunpack.c.l.b16 %v884
    %v1148 = vunpack.c.l.b16 %v885
    %v1149 = vunpack.c.l.b16 %v886
    %v1150 = vunpack.c.l.b16 %v887
    %v1151 = vunpack.c.l.b16 %v888
    %v1152 = vunpack.c.l.b16 %v889
    %v1153 = vunpack.c.l.b16 %v890
    %v1154 = vunpack.c.l.b16 %v891
    %v1155 = vunpack.c.l.b16 %v892
    %v1156 = vunpack.c.l.b16 %v893
    %v1157 = vunpack.c.l.b16 %v894
    %v1158 = vunpack.c.l.b16 %v895
    %v1159 = vunpack.c.l.b16 %v896
    %v1160 = vunpack.c.l.b16 %v897
    %v1161 = vpack.c.b16 %v1034, %v1033
    %v1162 = vpack.c.b16 %v1036, %v1035
    %v1163 = vpack.c.b16 %v1038, %v1037
    %v1164 = vpack.c.b16 %v1040, %v1039
    %v1165 = vpack.c.b16 %v1042, %v1041
    %v1166 = vpack.c.b16 %v1044, %v1043
    %v1167 = vpack.c.b16 %v1046, %v1045
    %v1168 = vpack.c.b16 %v1048, %v1047
    %v1169 = vpack.c.b16 %v1050, %v1049
    %v1170 = vpack.c.b16 %v1052, %v1051
    %v1171 = vpack.c.b16 %v1054, %v1053
    %v1172 = vpack.c.b16 %v1056, %v1055
    %v1173 = vpack.c.b16 %v1058, %v1057
    %v1174 = vpack.c.b16 %v1060, %v1059
    %v1175 = vpack.c.b16 %v1062, %v1061
    %v1176 = vpack.c.b16 %v1064, %v1063
    %v1177 = vpack.c.b16 %v1066, %v1065
    %v1178 = vpack.c.b16 %v1068, %v1067
    %v1179 = vpack.c.b16 %v1070, %v1069
    %v1180 = vpack.c.b16 %v1072, %v1071
    %v1181 = vpack.c.b16 %v1074, %v1073
    %v1182 = vpack.c.b16 %v1076, %v1075
    %v1183 = vpack.c.b16 %v1078, %v1077
    %v1184 = vpack.c.b16 %v1080, %v1079
    %v1185 = vpack.c.b16 %v1082, %v1081
    %v1186 = vpack.c.b16 %v1084, %v1083
    %v1187 = vpack.c.b16 %v1086, %v1085
    %v1188 = vpack.c.b16 %v1088, %v1087
    %v1189 = vpack.c.b16 %v1090, %v1089
    %v1190 = vpack.c.b16 %v1092, %v1091
    %v1191 = vpack.c.b16 %v1094, %v1093
    %v1192 = vpack.c.b16 %v1096, %v1095
    %v1193 = vpack.c.b16 %v1098, %v1097
    %v1194 = vpack.c.b16 %v1100, %v1099
    %v1195 = vpack.c.b16 %v1102, %v1101
    %v1196 = vpack.c.b16 %v1104, %v1103
    %v1197 = vpack.c.b16 %v1106, %v1105
    %v1198 = vpack.c.b16 %v1108, %v1107
    %v1199 = vpack.c.b16 %v1110, %v1109
    %v1200 = vpack.c.b16 %v1112, %v1111
    %v1201 = vpack.c.b16 %v1114, %v1113
    %v1202 = vpack.c.b16 %v1116, %v1115
    %v1203 = vpack.c.b16 %v1118, %v1117
    %v1204 = vpack.c.b16 %v1120, %v1119
    %v1205 = vpack.c.b16 %v1122, %v1121
    %v1206 = vpack.c.b16 %v1124, %v1123
    %v1207 = vpack.c.b16 %v1126, %v1125
    %v1208 = vpack.c.b16 %v1128, %v1127
    %v1209 = vpack.c.b16 %v1130, %v1129
    %v1210 = vpack.c.b16 %v1132, %v1131
    %v1211 = vpack.c.b16 %v1134, %v1133
    %v1212 = vpack.c.b16 %v1136, %v1135
    %v1213 = vpack.c.b16 %v1138, %v1137
    %v1214 = vpack.c.b16 %v1140, %v1139
    %v1215 = vpack.c.b16 %v1142, %v1141
    %v1216 = vpack.c.b16 %v1144, %v1143
    %v1217 = vpack.c.b16 %v1146, %v1145
    %v1218 = vpack.c.b16 %v1148, %v1147
    %v1219 = vpack.c.b16 %v1150, %v1149
    %v1220 = vpack.c.b16 %v1152, %v1151
    %v1221 = vpack.c.b16 %v1154, %v1153
    %v1222 = vpack.c.b16 %v1156, %v1155
    %v1223 = vpack.c.b16 %v1158, %v1157
    %v1224 = vpack.c.b16 %v1160, %v1159
    %1289 = vmatprep.subr.bf16.mxu0 0
    %1290 = vmatpush1.bf16.msra.mxu0 %v1161
    %1291 = vmatprep.subr.bf16.mxu0 0
    %1292 = vmatpush1.bf16.msra.mxu0 %v1162
    %1293 = vmatprep.subr.bf16.mxu0 0
    %1294 = vmatpush1.bf16.msra.mxu0 %v1163
    %1295 = vmatprep.subr.bf16.mxu0 0
    %1296 = vmatpush1.bf16.msra.mxu0 %v1164
    %1297 = vmatprep.subr.bf16.mxu0 0
    %1298 = vmatpush1.bf16.msra.mxu0 %v1165
    %1299 = vmatprep.subr.bf16.mxu0 0
    %1300 = vmatpush1.bf16.msra.mxu0 %v1166
    %1301 = vmatprep.subr.bf16.mxu0 0
    %1302 = vmatpush1.bf16.msra.mxu0 %v1167
    %1303 = vmatprep.subr.bf16.mxu0 0
    %1304 = vmatpush1.bf16.msra.mxu0 %v1168
    %1305 = vmatprep.subr.bf16.mxu0 0
    %1306 = vmatpush1.bf16.msra.mxu0 %v1169
    %1307 = vmatprep.subr.bf16.mxu0 0
    %1308 = vmatpush1.bf16.msra.mxu0 %v1170
    %1309 = vmatprep.subr.bf16.mxu0 0
    %1310 = vmatpush1.bf16.msra.mxu0 %v1171
    %1311 = vmatprep.subr.bf16.mxu0 0
    %1312 = vmatpush1.bf16.msra.mxu0 %v1172
    %1313 = vmatprep.subr.bf16.mxu0 0
    %1314 = vmatpush1.bf16.msra.mxu0 %v1173
    %1315 = vmatprep.subr.bf16.mxu0 0
    %1316 = vmatpush1.bf16.msra.mxu0 %v1174
    %1317 = vmatprep.subr.bf16.mxu0 0
    %1318 = vmatpush1.bf16.msra.mxu0 %v1175
    %1319 = vmatprep.subr.bf16.mxu0 0
    %1320 = vmatpush1.bf16.msra.mxu0 %v1176
    %1321 = vmatprep.mubr.bf16.mxu0 %v763
    %1322 = vmatmul.mubr.bf16.gmra.mrb[0].mxu0 %v762
    %v1323 = vpop.f32.mrb[0].mxu0
    %v1324 = vadd.f32 %v903, %v1323
    %v1325 = vpop.f32.mrb[0].mxu0
    %v1326 = vpop.f32.mrb[0].mxu0
    %v1327 = vpop.f32.mrb[0].mxu0
    %1328 = vdwg.mxu0
    %1329 = vmatprep.subr.bf16.mxu0 0
    %1330 = vmatpush1.bf16.msra.mxu0 %v1177
    %1331 = vmatprep.subr.bf16.mxu0 0
    %1332 = vmatpush1.bf16.msra.mxu0 %v1178
    %1333 = vmatprep.subr.bf16.mxu0 0
    %1334 = vmatpush1.bf16.msra.mxu0 %v1179
    %1335 = vmatprep.subr.bf16.mxu0 0
    %1336 = vmatpush1.bf16.msra.mxu0 %v1180
    %1337 = vmatprep.subr.bf16.mxu0 0
    %1338 = vmatpush1.bf16.msra.mxu0 %v1181
    %1339 = vmatprep.subr.bf16.mxu0 0
    %1340 = vmatpush1.bf16.msra.mxu0 %v1182
    %1341 = vmatprep.subr.bf16.mxu0 0
    %1342 = vmatpush1.bf16.msra.mxu0 %v1183
    %1343 = vmatprep.subr.bf16.mxu0 0
    %1344 = vmatpush1.bf16.msra.mxu0 %v1184
    %1345 = vmatprep.subr.bf16.mxu0 0
    %1346 = vmatpush1.bf16.msra.mxu0 %v1185
    %1347 = vmatprep.subr.bf16.mxu0 0
    %1348 = vmatpush1.bf16.msra.mxu0 %v1186
    %1349 = vmatprep.subr.bf16.mxu0 0
    %1350 = vmatpush1.bf16.msra.mxu0 %v1187
    %1351 = vmatprep.subr.bf16.mxu0 0
    %1352 = vmatpush1.bf16.msra.mxu0 %v1188
    %1353 = vmatprep.subr.bf16.mxu0 0
    %1354 = vmatpush1.bf16.msra.mxu0 %v1189
    %1355 = vmatprep.subr.bf16.mxu0 0
    %1356 = vmatpush1.bf16.msra.mxu0 %v1190
    %1357 = vmatprep.subr.bf16.mxu0 0
    %1358 = vmatpush1.bf16.msra.mxu0 %v1191
    %1359 = vmatprep.subr.bf16.mxu0 0
    %1360 = vmatpush1.bf16.msra.mxu0 %v1192
    %1361 = vmatprep.mubr.bf16.mxu0 %v765
    %1362 = vmatmul.mubr.bf16.gmra.mrb[0].mxu0 %v764
    %v1363 = vpop.f32.mrb[0].mxu0
    %v1364 = vadd.f32 %v1324, %v1363
    %v1365 = vpop.f32.mrb[0].mxu0
    %v1366 = vpop.f32.mrb[0].mxu0
    %v1367 = vpop.f32.mrb[0].mxu0
    %1368 = vdwg.mxu0
    %1369 = vmatprep.subr.bf16.mxu0 0
    %1370 = vmatpush1.bf16.msra.mxu0 %v1193
    %1371 = vmatprep.subr.bf16.mxu0 0
    %1372 = vmatpush1.bf16.msra.mxu0 %v1194
    %1373 = vmatprep.subr.bf16.mxu0 0
    %1374 = vmatpush1.bf16.msra.mxu0 %v1195
    %1375 = vmatprep.subr.bf16.mxu0 0
    %1376 = vmatpush1.bf16.msra.mxu0 %v1196
    %1377 = vmatprep.subr.bf16.mxu0 0
    %1378 = vmatpush1.bf16.msra.mxu0 %v1197
    %1379 = vmatprep.subr.bf16.mxu0 0
    %1380 = vmatpush1.bf16.msra.mxu0 %v1198
    %1381 = vmatprep.subr.bf16.mxu0 0
    %1382 = vmatpush1.bf16.msra.mxu0 %v1199
    %1383 = vmatprep.subr.bf16.mxu0 0
    %1384 = vmatpush1.bf16.msra.mxu0 %v1200
    %1385 = vmatprep.subr.bf16.mxu0 0
    %1386 = vmatpush1.bf16.msra.mxu0 %v1201
    %1387 = vmatprep.subr.bf16.mxu0 0
    %1388 = vmatpush1.bf16.msra.mxu0 %v1202
    %1389 = vmatprep.subr.bf16.mxu0 0
    %1390 = vmatpush1.bf16.msra.mxu0 %v1203
    %1391 = vmatprep.subr.bf16.mxu0 0
    %1392 = vmatpush1.bf16.msra.mxu0 %v1204
    %1393 = vmatprep.subr.bf16.mxu0 0
    %1394 = vmatpush1.bf16.msra.mxu0 %v1205
    %1395 = vmatprep.subr.bf16.mxu0 0
    %1396 = vmatpush1.bf16.msra.mxu0 %v1206
    %1397 = vmatprep.subr.bf16.mxu0 0
    %1398 = vmatpush1.bf16.msra.mxu0 %v1207
    %1399 = vmatprep.subr.bf16.mxu0 0
    %1400 = vmatpush1.bf16.msra.mxu0 %v1208
    %1401 = vmatprep.mubr.bf16.mxu0 %v767
    %1402 = vmatmul.mubr.bf16.gmra.mrb[0].mxu0 %v766
    %v1403 = vpop.f32.mrb[0].mxu0
    %v1404 = vadd.f32 %v1364, %v1403
    %v1405 = vpop.f32.mrb[0].mxu0
    %v1406 = vpop.f32.mrb[0].mxu0
    %v1407 = vpop.f32.mrb[0].mxu0
    %1408 = vdwg.mxu0
    %1409 = vmatprep.subr.bf16.mxu0 0
    %1410 = vmatpush1.bf16.msra.mxu0 %v1209
    %1411 = vmatprep.subr.bf16.mxu0 0
    %1412 = vmatpush1.bf16.msra.mxu0 %v1210
    %1413 = vmatprep.subr.bf16.mxu0 0
    %1414 = vmatpush1.bf16.msra.mxu0 %v1211
    %1415 = vmatprep.subr.bf16.mxu0 0
    %1416 = vmatpush1.bf16.msra.mxu0 %v1212
    %1417 = vmatprep.subr.bf16.mxu0 0
    %1418 = vmatpush1.bf16.msra.mxu0 %v1213
    %1419 = vmatprep.subr.bf16.mxu0 0
    %1420 = vmatpush1.bf16.msra.mxu0 %v1214
    %1421 = vmatprep.subr.bf16.mxu0 0
    %1422 = vmatpush1.bf16.msra.mxu0 %v1215
    %1423 = vmatprep.subr.bf16.mxu0 0
    %1424 = vmatpush1.bf16.msra.mxu0 %v1216
    %1425 = vmatprep.subr.bf16.mxu0 0
    %1426 = vmatpush1.bf16.msra.mxu0 %v1217
    %1427 = vmatprep.subr.bf16.mxu0 0
    %1428 = vmatpush1.bf16.msra.mxu0 %v1218
    %1429 = vmatprep.subr.bf16.mxu0 0
    %1430 = vmatpush1.bf16.msra.mxu0 %v1219
    %1431 = vmatprep.subr.bf16.mxu0 0
    %1432 = vmatpush1.bf16.msra.mxu0 %v1220
    %1433 = vmatprep.subr.bf16.mxu0 0
    %1434 = vmatpush1.bf16.msra.mxu0 %v1221
    %1435 = vmatprep.subr.bf16.mxu0 0
    %1436 = vmatpush1.bf16.msra.mxu0 %v1222
    %1437 = vmatprep.subr.bf16.mxu0 0
    %1438 = vmatpush1.bf16.msra.mxu0 %v1223
    %1439 = vmatprep.subr.bf16.mxu0 0
    %1440 = vmatpush1.bf16.msra.mxu0 %v1224
    %1441 = vmatprep.mubr.bf16.mxu0 %v769
    %1442 = vmatmul.mubr.bf16.gmra.mrb[0].mxu0 %v768
    %v1443 = vpop.f32.mrb[0].mxu0
    %v1444 = vadd.f32 %v1404, %v1443
    %v1445 = vpop.f32.mrb[0].mxu0
    %v1446 = vpop.f32.mrb[0].mxu0
    %v1447 = vpop.f32.mrb[0].mxu0
    %1448 = vdwg.mxu0
    %1449 = vst [vmem:[#allocation10] sm:$0xff] %v1444
    // Predicated region
    $region46: #{tpu_custom_call.1} parent=1 // pred_check
      _
    $region47: #{tpu_custom_call.1} parent=1 // pred_check_branch
      %1451 = sbr.rel (0) target = $region49
    $region48: #{tpu_custom_call.1} parent=1 // pred_region
      %s1453 = ssub.s32 128, 128
      %1454 = vsyncadd [#allocation4], %s1453
      %s1456 = sshll.u32 [#allocation10], 4
      %s1457 = int_to_ptr.vmem [resolvable:$true] %s1456
      %1459 = dma.vmem_to_hbm [thread:$0]  %s1457, 128, %s7, [#allocation4]
    $region49: #{tpu_custom_call.1} parent=1 // pred_fallthru
      _
    // Predicated region
    $region50: #{tpu_custom_call.1} parent=1 // pred_check
      _
    $region51: #{tpu_custom_call.1} parent=1 // pred_check_branch
      %1461 = sbr.rel (0) target = $region53
    $region52: #{tpu_custom_call.1} parent=1 // pred_region
      %1462 = dma.done [#allocation4], 128
    $region53: #{tpu_custom_call.1} parent=1 // pred_fallthru
      _
    %1463 = vsyncpa [#allocation3], 1
    %1464 = vsyncpa [#allocation6], 1
    %1465 = vsyncpa [#allocation9], 1
    %1466 = vsyncpa [#allocation4], 1

</llo_original>
